<compile_context>
chip_gen: v7x
topology: tpu7x:2x2x1
jax: 0.10.0
libtpu: 0.0.40
codegen_flags: <defaults>
</compile_context>

<pallas_src>
import functools

import jax
import jax.numpy as jnp
from jax.experimental import pallas as pl
from jax.experimental.pallas import tpu as pltpu


# ----------------------------- in-kernel helpers -----------------------------

def _split_heads(x, nb, seq, nh, hd):
    """(nb*seq, nh*hd) -> (nb*nh, seq, hd) via static slices + leading stack."""
    parts = []
    for b in range(nb):
        rows = x[b * seq:(b + 1) * seq, :]              # (seq, nh*hd)
        for h in range(nh):
            parts.append(rows[:, h * hd:(h + 1) * hd])  # (seq, hd)
    return jnp.stack(parts, axis=0)                     # (nb*nh, seq, hd)


def _merge_heads(x, nb, nh):
    """(nb*nh, Lq, hd) -> (nb*Lq, nh*hd)  (inverse of _split_heads)."""
    rows = [jnp.concatenate([x[b * nh + h] for h in range(nh)], axis=-1)
            for b in range(nb)]                         # nb x (Lq, nh*hd)
    return rows[0] if nb == 1 else jnp.concatenate(rows, axis=0)


def _heads_to_lanes(p, nb, nh):
    """(nb*nh, Lq, Lk) -> (nb, Lq, nh*Lk): lane-dense attn-weights layout."""
    per_b = [jnp.concatenate([p[b * nh + h] for h in range(nh)], axis=-1)
             for b in range(nb)]                        # nb x (Lq, nh*Lk)
    return jnp.stack(per_b, axis=0)


# --------------------------------- kernel ------------------------------------

def _cross_attention_kernel(q_ref, k_ref, v_ref, wqkv_ref, bqkv_ref,
                            wo_ref, bo_ref, out_ref, attnw_ref, *, num_heads):
    """One grid step = `nb` batch elements.

    q_ref:     (nb, Lq, E)
    k_ref:     (nb, Lk, E)
    v_ref:     (nb, Lk, E)
    wqkv_ref:  (3, E, E)    bf16, lane-dense (in, out); Q pre-scaled by 1/sqrt(hd)
    bqkv_ref:  (3, 1, E)    f32 biases (Q pre-scaled)
    wo_ref:    (E, E)       bf16, lane-dense (in, out)
    bo_ref:    (1, E)       f32
    out_ref:   (nb, Lq, E)
    attnw_ref: (nb, Lq, nh*Lk)   lane-dense; wrapper restores (B, nh, Lq, Lk)
    """
    nb, Lq, E = q_ref.shape
    Lk = k_ref.shape[1]
    nh = num_heads
    hd = E // nh
    f32, bf16 = jnp.float32, jnp.bfloat16

    # Batch folded into matmul rows; flat lane-dense projections (depth E).
    q2 = q_ref[...].reshape(nb * Lq, E).astype(bf16)
    k2 = k_ref[...].reshape(nb * Lk, E).astype(bf16)
    v2 = v_ref[...].reshape(nb * Lk, E).astype(bf16)

    qh = jnp.dot(q2, wqkv_ref[0], preferred_element_type=f32) + bqkv_ref[0]
    kh = jnp.dot(k2, wqkv_ref[1], preferred_element_type=f32) + bqkv_ref[1]
    vh = jnp.dot(v2, wqkv_ref[2], preferred_element_type=f32) + bqkv_ref[2]

    # Head-major operands only where the batched contractions need them.
    q3 = _split_heads(qh, nb, Lq, nh, hd).astype(bf16)   # (nb*nh, Lq, hd)
    k3 = _split_heads(kh, nb, Lk, nh, hd).astype(bf16)   # (nb*nh, Lk, hd)
    v3 = _split_heads(vh, nb, Lk, nh, hd).astype(bf16)   # (nb*nh, Lk, hd)

    # scores = (Q / sqrt(hd)) @ K^T   (scale already folded into wq / bq)
    s = jnp.einsum("bqd,bkd->bqk", q3, k3, preferred_element_type=f32)
    m = jnp.max(s, axis=-1, keepdims=True)
    e = jnp.exp(s - m)
    p = e / jnp.sum(e, axis=-1, keepdims=True)           # exact softmax

    ah = jnp.einsum("bqk,bkd->bqd", p.astype(bf16), v3,
                    preferred_element_type=f32)           # (nb*nh, Lq, hd)

    # Head merge = lane concat; single output-projection matmul (depth E).
    a2 = _merge_heads(ah, nb, nh).astype(bf16)            # (nb*Lq, E)
    out = jnp.dot(a2, wo_ref[...], preferred_element_type=f32) + bo_ref[...]

    out_ref[...] = out.reshape(nb, Lq, E).astype(out_ref.dtype)
    attnw_ref[...] = _heads_to_lanes(p, nb, nh).astype(attnw_ref.dtype)


# --------------------------------- wrapper -----------------------------------

def _multi_tensorcore_chip():
    """True on chips with >1 TensorCore per chip (v7x / v4 / v5p)."""
    try:
        kind = jax.devices()[0].device_kind.lower()
    except Exception:
        return False
    return ("v7" in kind) or ("v4" in kind) or ("v5p" in kind)


def cross_attention(query, key, value, params, *, num_heads, batch_grid=None):
    """query: (B, Lq, E), key/value: (B, Lk, E). Returns (output, attn_weights)."""
    B, Lq, E = query.shape
    Lk = key.shape[1]
    nh = num_heads

    if batch_grid is None:
        # Keep the batch on a "parallel" grid only where a second TensorCore
        # can pick it up; otherwise collapse it into one kernel invocation.
        batch_grid = (B > 1) and _multi_tensorcore_chip()
    steps = B if batch_grid else 1
    nb = B // steps
    assert nb * steps == B

    wqkv = params["w_qkv"]
    bqkv = params["b_qkv"]
    w_out = params["w_out"]
    b_out = params["b_out"]

    def rep(arr):  # full-array block, replicated across the grid
        return pl.BlockSpec(arr.shape, lambda b, _n=arr.ndim: (0,) * _n)

    in_specs = [
        pl.BlockSpec((nb, Lq, E), lambda b: (b, 0, 0)),   # query
        pl.BlockSpec((nb, Lk, E), lambda b: (b, 0, 0)),   # key
        pl.BlockSpec((nb, Lk, E), lambda b: (b, 0, 0)),   # value
        rep(wqkv), rep(bqkv), rep(w_out), rep(b_out),
    ]
    out_specs = (
        pl.BlockSpec((nb, Lq, E), lambda b: (b, 0, 0)),
        pl.BlockSpec((nb, Lq, nh * Lk), lambda b: (b, 0, 0)),
    )
    out_shape = (
        jax.ShapeDtypeStruct((B, Lq, E), jnp.float32),
        jax.ShapeDtypeStruct((B, Lq, nh * Lk), jnp.float32),
    )

    kernel = functools.partial(_cross_attention_kernel, num_heads=nh)
    out, attnw_dense = pl.pallas_call(
        kernel,
        out_shape=out_shape,
        grid=(steps,),
        in_specs=in_specs,
        out_specs=out_specs,
        compiler_params=pltpu.CompilerParams(dimension_semantics=("parallel",)),
    )(query, key, value, wqkv, bqkv, w_out, b_out)

    # Layout plumbing (outside the kernel): (B, Lq, nh*Lk) -> (B, nh, Lq, Lk).
    attn_w = attnw_dense.reshape(B, Lq, nh, Lk).transpose(0, 2, 1, 3)
    return out, attn_w


def prepare_params(raw, num_heads):
    """One-time host-side packing of PyTorch-layout Linear params
    (W: (out, in), b: (out,)) into flat, lane-dense, scale-folded bf16 layout."""
    E = raw["Wq"].shape[0]
    hd = E // num_heads
    scale = 1.0 / (hd ** 0.5)

    w_qkv = jnp.stack([raw["Wq"].T * scale, raw["Wk"].T, raw["Wv"].T])  # (3,E,E)
    b_qkv = jnp.stack([raw["bq"] * scale, raw["bk"], raw["bv"]])[:, None, :]  # (3,1,E)
    return {
        "w_qkv": w_qkv.astype(jnp.bfloat16),
        "b_qkv": b_qkv.astype(jnp.float32),
        "w_out": raw["Wo"].T.astype(jnp.bfloat16),          # (E, E)
        "b_out": raw["bo"].reshape(1, E).astype(jnp.float32),
    }


def _reference(query, key, value, raw, num_heads):
    """Plain-JAX replica of the PyTorch forward, for verification."""
    B, Lq, E = query.shape
    Lk = key.shape[1]
    hd = E // num_heads
    lin = lambda x, W, b: x @ W.T + b
    Q = lin(query, raw["Wq"], raw["bq"]).reshape(B, Lq, num_heads, hd).transpose(0, 2, 1, 3)
    K = lin(key, raw["Wk"], raw["bk"]).reshape(B, Lk, num_heads, hd).transpose(0, 2, 1, 3)
    V = lin(value, raw["Wv"], raw["bv"]).reshape(B, Lk, num_heads, hd).transpose(0, 2, 1, 3)
    scores = jnp.einsum("bhqd,bhkd->bhqk", Q, K) / jnp.sqrt(jnp.float32(hd))
    w = jax.nn.softmax(scores, axis=-1)
    attn = jnp.einsum("bhqk,bhkd->bhqd", w, V).transpose(0, 2, 1, 3).reshape(B, Lq, E)
    out = lin(attn, raw["Wo"], raw["bo"])
    return out, w


if __name__ == "__main__":
    B = 2
    embed_dim = 32
    num_heads = 4
    Lq = 8    # query sequence length
    Lk = 16   # key/value sequence length

    key0 = jax.random.PRNGKey(0)
    ks = jax.random.split(key0, 11)

    def w_init(k, shape, scale=0.1):
        return (scale * jax.random.normal(k, shape)).astype(jnp.float32)

    raw = {
        "Wq": w_init(ks[0], (embed_dim, embed_dim)),
        "bq": w_init(ks[1], (embed_dim,), 0.02),
        "Wk": w_init(ks[2], (embed_dim, embed_dim)),
        "bk": w_init(ks[3], (embed_dim,), 0.02),
        "Wv": w_init(ks[4], (embed_dim, embed_dim)),
        "bv": w_init(ks[5], (embed_dim,), 0.02),
        "Wo": w_init(ks[6], (embed_dim, embed_dim)),
        "bo": w_init(ks[7], (embed_dim,), 0.02),
    }
    query = jax.random.normal(ks[8], (B, Lq, embed_dim), dtype=jnp.float32)
    key_x = jax.random.normal(ks[9], (B, Lk, embed_dim), dtype=jnp.float32)
    value_x = jax.random.normal(ks[10], (B, Lk, embed_dim), dtype=jnp.float32)

    params = prepare_params(raw, num_heads)
    out, attn_w = cross_attention(query, key_x, value_x, params, num_heads=num_heads)
    out = jax.block_until_ready(out)
    attn_w = jax.block_until_ready(attn_w)
    assert out.shape == (B, Lq, embed_dim), out.shape
    assert attn_w.shape == (B, num_heads, Lq, Lk), attn_w.shape

    ref_out, ref_w = _reference(query, key_x, value_x, raw, num_heads)
    # Tolerance covers the bf16 MXU operands (accumulation stays f32).
    assert jnp.allclose(out, ref_out, atol=2e-2, rtol=2e-2), \
        float(jnp.max(jnp.abs(out - ref_out)))
    assert jnp.allclose(attn_w, ref_w, atol=2e-2, rtol=2e-2), \
        float(jnp.max(jnp.abs(attn_w - ref_w)))

    print("KERNEL_OK")
</pallas_src>

<mosaic_0001>
module attributes {stable_mosaic.version = 11 : i64} {
  func.func @_cross_attention_kernel(%arg0: i32, %arg1: memref<2x8x32xf32, #tpu.memory_space<vmem>>, %arg2: memref<2x16x32xf32, #tpu.memory_space<vmem>>, %arg3: memref<2x16x32xf32, #tpu.memory_space<vmem>>, %arg4: memref<3x32x32xbf16, #tpu.memory_space<vmem>>, %arg5: memref<3x1x32xf32, #tpu.memory_space<vmem>>, %arg6: memref<32x32xbf16, #tpu.memory_space<vmem>>, %arg7: memref<1x32xf32, #tpu.memory_space<vmem>>, %arg8: memref<2x8x32xf32, #tpu.memory_space<vmem>>, %arg9: memref<2x8x64xf32, #tpu.memory_space<vmem>>) attributes {dimension_semantics = [#tpu.dimension_semantics<parallel>], iteration_bounds = array<i64: 1>, scalar_prefetch = 0 : i64, scratch_operands = 0 : i64, tpu.core_type = #tpu.core_type<tc>, window_params = [{transform_indices = @transform_0, window_bounds = array<i64: 2, 8, 32>}, {transform_indices = @transform_1, window_bounds = array<i64: 2, 16, 32>}, {transform_indices = @transform_2, window_bounds = array<i64: 2, 16, 32>}, {pipeline_mode = #tpu.pipeline_mode<synchronous>, transform_indices = @transform_3, window_bounds = array<i64: 3, 32, 32>}, {pipeline_mode = #tpu.pipeline_mode<synchronous>, transform_indices = @transform_4, window_bounds = array<i64: 3, 1, 32>}, {pipeline_mode = #tpu.pipeline_mode<synchronous>, transform_indices = @transform_5, window_bounds = array<i64: 32, 32>}, {pipeline_mode = #tpu.pipeline_mode<synchronous>, transform_indices = @transform_6, window_bounds = array<i64: 1, 32>}, {transform_indices = @transform_7, window_bounds = array<i64: 2, 8, 32>}, {transform_indices = @transform_8, window_bounds = array<i64: 2, 8, 64>}]} {
    %c0 = arith.constant 0 : index
    %c0_0 = arith.constant 0 : index
    %c0_1 = arith.constant 0 : index
    %0 = vector.load %arg1[%c0, %c0_0, %c0_1] : memref<2x8x32xf32, #tpu.memory_space<vmem>>, vector<2x8x32xf32>
    %1 = vector.shape_cast %0 : vector<2x8x32xf32> to vector<16x32xf32>
    %2 = arith.truncf %1 : vector<16x32xf32> to vector<16x32xbf16>
    %c0_2 = arith.constant 0 : index
    %c0_3 = arith.constant 0 : index
    %c0_4 = arith.constant 0 : index
    %3 = vector.load %arg2[%c0_2, %c0_3, %c0_4] : memref<2x16x32xf32, #tpu.memory_space<vmem>>, vector<2x16x32xf32>
    %4 = vector.shape_cast %3 : vector<2x16x32xf32> to vector<32x32xf32>
    %5 = arith.truncf %4 : vector<32x32xf32> to vector<32x32xbf16>
    %c0_5 = arith.constant 0 : index
    %c0_6 = arith.constant 0 : index
    %c0_7 = arith.constant 0 : index
    %6 = vector.load %arg3[%c0_5, %c0_6, %c0_7] : memref<2x16x32xf32, #tpu.memory_space<vmem>>, vector<2x16x32xf32>
    %7 = vector.shape_cast %6 : vector<2x16x32xf32> to vector<32x32xf32>
    %8 = arith.truncf %7 : vector<32x32xf32> to vector<32x32xbf16>
    %c0_8 = arith.constant 0 : index
    %c0_9 = arith.constant 0 : index
    %c0_10 = arith.constant 0 : index
    %9 = vector.load %arg4[%c0_8, %c0_9, %c0_10] : memref<3x32x32xbf16, #tpu.memory_space<vmem>>, vector<1x32x32xbf16>
    %10 = vector.shape_cast %9 : vector<1x32x32xbf16> to vector<32x32xbf16>
    %cst = arith.constant dense<0.000000e+00> : vector<16x32xf32>
    %11 = tpu.matmul %2, %10, %cst {dimension_numbers = #tpu.dot_dimension_numbers<[1], [0], [0], [1], [0, 0, 1, 1], [], []>} : vector<16x32xbf16>, vector<32x32xbf16>, vector<16x32xf32> -> vector<16x32xf32>
    %c0_11 = arith.constant 0 : index
    %c0_12 = arith.constant 0 : index
    %c0_13 = arith.constant 0 : index
    %12 = vector.load %arg5[%c0_11, %c0_12, %c0_13] : memref<3x1x32xf32, #tpu.memory_space<vmem>>, vector<1x1x32xf32>
    %13 = vector.shape_cast %12 : vector<1x1x32xf32> to vector<1x32xf32>
    %14 = vector.broadcast %13 : vector<1x32xf32> to vector<16x32xf32>
    %15 = arith.addf %11, %14 : vector<16x32xf32>
    %c1 = arith.constant 1 : index
    %c0_14 = arith.constant 0 : index
    %c0_15 = arith.constant 0 : index
    %16 = vector.load %arg4[%c1, %c0_14, %c0_15] : memref<3x32x32xbf16, #tpu.memory_space<vmem>>, vector<1x32x32xbf16>
    %17 = vector.shape_cast %16 : vector<1x32x32xbf16> to vector<32x32xbf16>
    %cst_16 = arith.constant dense<0.000000e+00> : vector<32x32xf32>
    %18 = tpu.matmul %5, %17, %cst_16 {dimension_numbers = #tpu.dot_dimension_numbers<[1], [0], [0], [1], [0, 0, 1, 1], [], []>} : vector<32x32xbf16>, vector<32x32xbf16>, vector<32x32xf32> -> vector<32x32xf32>
    %c1_17 = arith.constant 1 : index
    %c0_18 = arith.constant 0 : index
    %c0_19 = arith.constant 0 : index
    %19 = vector.load %arg5[%c1_17, %c0_18, %c0_19] : memref<3x1x32xf32, #tpu.memory_space<vmem>>, vector<1x1x32xf32>
    %20 = vector.shape_cast %19 : vector<1x1x32xf32> to vector<1x32xf32>
    %21 = vector.broadcast %20 : vector<1x32xf32> to vector<32x32xf32>
    %22 = arith.addf %18, %21 : vector<32x32xf32>
    %c2 = arith.constant 2 : index
    %c0_20 = arith.constant 0 : index
    %c0_21 = arith.constant 0 : index
    %23 = vector.load %arg4[%c2, %c0_20, %c0_21] : memref<3x32x32xbf16, #tpu.memory_space<vmem>>, vector<1x32x32xbf16>
    %24 = vector.shape_cast %23 : vector<1x32x32xbf16> to vector<32x32xbf16>
    %cst_22 = arith.constant dense<0.000000e+00> : vector<32x32xf32>
    %25 = tpu.matmul %8, %24, %cst_22 {dimension_numbers = #tpu.dot_dimension_numbers<[1], [0], [0], [1], [0, 0, 1, 1], [], []>} : vector<32x32xbf16>, vector<32x32xbf16>, vector<32x32xf32> -> vector<32x32xf32>
    %c2_23 = arith.constant 2 : index
    %c0_24 = arith.constant 0 : index
    %c0_25 = arith.constant 0 : index
    %26 = vector.load %arg5[%c2_23, %c0_24, %c0_25] : memref<3x1x32xf32, #tpu.memory_space<vmem>>, vector<1x1x32xf32>
    %27 = vector.shape_cast %26 : vector<1x1x32xf32> to vector<1x32xf32>
    %28 = vector.broadcast %27 : vector<1x32xf32> to vector<32x32xf32>
    %29 = arith.addf %25, %28 : vector<32x32xf32>
    %30 = vector.extract_strided_slice %15 {offsets = [0, 0], sizes = [8, 32], strides = [1, 1]} : vector<16x32xf32> to vector<8x32xf32>
    %31 = vector.extract_strided_slice %30 {offsets = [0, 0], sizes = [8, 8], strides = [1, 1]} : vector<8x32xf32> to vector<8x8xf32>
    %32 = vector.extract_strided_slice %30 {offsets = [0, 8], sizes = [8, 8], strides = [1, 1]} : vector<8x32xf32> to vector<8x8xf32>
    %33 = vector.extract_strided_slice %30 {offsets = [0, 16], sizes = [8, 8], strides = [1, 1]} : vector<8x32xf32> to vector<8x8xf32>
    %34 = vector.extract_strided_slice %30 {offsets = [0, 24], sizes = [8, 8], strides = [1, 1]} : vector<8x32xf32> to vector<8x8xf32>
    %35 = vector.extract_strided_slice %15 {offsets = [8, 0], sizes = [8, 32], strides = [1, 1]} : vector<16x32xf32> to vector<8x32xf32>
    %36 = vector.extract_strided_slice %35 {offsets = [0, 0], sizes = [8, 8], strides = [1, 1]} : vector<8x32xf32> to vector<8x8xf32>
    %37 = vector.extract_strided_slice %35 {offsets = [0, 8], sizes = [8, 8], strides = [1, 1]} : vector<8x32xf32> to vector<8x8xf32>
    %38 = vector.extract_strided_slice %35 {offsets = [0, 16], sizes = [8, 8], strides = [1, 1]} : vector<8x32xf32> to vector<8x8xf32>
    %39 = vector.extract_strided_slice %35 {offsets = [0, 24], sizes = [8, 8], strides = [1, 1]} : vector<8x32xf32> to vector<8x8xf32>
    %40 = vector.shape_cast %31 : vector<8x8xf32> to vector<1x8x8xf32>
    %41 = vector.shape_cast %32 : vector<8x8xf32> to vector<1x8x8xf32>
    %42 = vector.shape_cast %33 : vector<8x8xf32> to vector<1x8x8xf32>
    %43 = vector.shape_cast %34 : vector<8x8xf32> to vector<1x8x8xf32>
    %44 = vector.shape_cast %36 : vector<8x8xf32> to vector<1x8x8xf32>
    %45 = vector.shape_cast %37 : vector<8x8xf32> to vector<1x8x8xf32>
    %46 = vector.shape_cast %38 : vector<8x8xf32> to vector<1x8x8xf32>
    %47 = vector.shape_cast %39 : vector<8x8xf32> to vector<1x8x8xf32>
    %48 = tpu.concatenate %40, %41, %42, %43, %44, %45, %46, %47 in 0 : vector<1x8x8xf32>, vector<1x8x8xf32>, vector<1x8x8xf32>, vector<1x8x8xf32>, vector<1x8x8xf32>, vector<1x8x8xf32>, vector<1x8x8xf32>, vector<1x8x8xf32> -> vector<8x8x8xf32>
    %49 = arith.truncf %48 : vector<8x8x8xf32> to vector<8x8x8xbf16>
    %50 = vector.extract_strided_slice %22 {offsets = [0, 0], sizes = [16, 32], strides = [1, 1]} : vector<32x32xf32> to vector<16x32xf32>
    %51 = vector.extract_strided_slice %50 {offsets = [0, 0], sizes = [16, 8], strides = [1, 1]} : vector<16x32xf32> to vector<16x8xf32>
    %52 = vector.extract_strided_slice %50 {offsets = [0, 8], sizes = [16, 8], strides = [1, 1]} : vector<16x32xf32> to vector<16x8xf32>
    %53 = vector.extract_strided_slice %50 {offsets = [0, 16], sizes = [16, 8], strides = [1, 1]} : vector<16x32xf32> to vector<16x8xf32>
    %54 = vector.extract_strided_slice %50 {offsets = [0, 24], sizes = [16, 8], strides = [1, 1]} : vector<16x32xf32> to vector<16x8xf32>
    %55 = vector.extract_strided_slice %22 {offsets = [16, 0], sizes = [16, 32], strides = [1, 1]} : vector<32x32xf32> to vector<16x32xf32>
    %56 = vector.extract_strided_slice %55 {offsets = [0, 0], sizes = [16, 8], strides = [1, 1]} : vector<16x32xf32> to vector<16x8xf32>
    %57 = vector.extract_strided_slice %55 {offsets = [0, 8], sizes = [16, 8], strides = [1, 1]} : vector<16x32xf32> to vector<16x8xf32>
    %58 = vector.extract_strided_slice %55 {offsets = [0, 16], sizes = [16, 8], strides = [1, 1]} : vector<16x32xf32> to vector<16x8xf32>
    %59 = vector.extract_strided_slice %55 {offsets = [0, 24], sizes = [16, 8], strides = [1, 1]} : vector<16x32xf32> to vector<16x8xf32>
    %60 = vector.shape_cast %51 : vector<16x8xf32> to vector<1x16x8xf32>
    %61 = vector.shape_cast %52 : vector<16x8xf32> to vector<1x16x8xf32>
    %62 = vector.shape_cast %53 : vector<16x8xf32> to vector<1x16x8xf32>
    %63 = vector.shape_cast %54 : vector<16x8xf32> to vector<1x16x8xf32>
    %64 = vector.shape_cast %56 : vector<16x8xf32> to vector<1x16x8xf32>
    %65 = vector.shape_cast %57 : vector<16x8xf32> to vector<1x16x8xf32>
    %66 = vector.shape_cast %58 : vector<16x8xf32> to vector<1x16x8xf32>
    %67 = vector.shape_cast %59 : vector<16x8xf32> to vector<1x16x8xf32>
    %68 = tpu.concatenate %60, %61, %62, %63, %64, %65, %66, %67 in 0 : vector<1x16x8xf32>, vector<1x16x8xf32>, vector<1x16x8xf32>, vector<1x16x8xf32>, vector<1x16x8xf32>, vector<1x16x8xf32>, vector<1x16x8xf32>, vector<1x16x8xf32> -> vector<8x16x8xf32>
    %69 = arith.truncf %68 : vector<8x16x8xf32> to vector<8x16x8xbf16>
    %70 = vector.extract_strided_slice %29 {offsets = [0, 0], sizes = [16, 32], strides = [1, 1]} : vector<32x32xf32> to vector<16x32xf32>
    %71 = vector.extract_strided_slice %70 {offsets = [0, 0], sizes = [16, 8], strides = [1, 1]} : vector<16x32xf32> to vector<16x8xf32>
    %72 = vector.extract_strided_slice %70 {offsets = [0, 8], sizes = [16, 8], strides = [1, 1]} : vector<16x32xf32> to vector<16x8xf32>
    %73 = vector.extract_strided_slice %70 {offsets = [0, 16], sizes = [16, 8], strides = [1, 1]} : vector<16x32xf32> to vector<16x8xf32>
    %74 = vector.extract_strided_slice %70 {offsets = [0, 24], sizes = [16, 8], strides = [1, 1]} : vector<16x32xf32> to vector<16x8xf32>
    %75 = vector.extract_strided_slice %29 {offsets = [16, 0], sizes = [16, 32], strides = [1, 1]} : vector<32x32xf32> to vector<16x32xf32>
    %76 = vector.extract_strided_slice %75 {offsets = [0, 0], sizes = [16, 8], strides = [1, 1]} : vector<16x32xf32> to vector<16x8xf32>
    %77 = vector.extract_strided_slice %75 {offsets = [0, 8], sizes = [16, 8], strides = [1, 1]} : vector<16x32xf32> to vector<16x8xf32>
    %78 = vector.extract_strided_slice %75 {offsets = [0, 16], sizes = [16, 8], strides = [1, 1]} : vector<16x32xf32> to vector<16x8xf32>
    %79 = vector.extract_strided_slice %75 {offsets = [0, 24], sizes = [16, 8], strides = [1, 1]} : vector<16x32xf32> to vector<16x8xf32>
    %80 = vector.shape_cast %71 : vector<16x8xf32> to vector<1x16x8xf32>
    %81 = vector.shape_cast %72 : vector<16x8xf32> to vector<1x16x8xf32>
    %82 = vector.shape_cast %73 : vector<16x8xf32> to vector<1x16x8xf32>
    %83 = vector.shape_cast %74 : vector<16x8xf32> to vector<1x16x8xf32>
    %84 = vector.shape_cast %76 : vector<16x8xf32> to vector<1x16x8xf32>
    %85 = vector.shape_cast %77 : vector<16x8xf32> to vector<1x16x8xf32>
    %86 = vector.shape_cast %78 : vector<16x8xf32> to vector<1x16x8xf32>
    %87 = vector.shape_cast %79 : vector<16x8xf32> to vector<1x16x8xf32>
    %88 = tpu.concatenate %80, %81, %82, %83, %84, %85, %86, %87 in 0 : vector<1x16x8xf32>, vector<1x16x8xf32>, vector<1x16x8xf32>, vector<1x16x8xf32>, vector<1x16x8xf32>, vector<1x16x8xf32>, vector<1x16x8xf32>, vector<1x16x8xf32> -> vector<8x16x8xf32>
    %89 = arith.truncf %88 : vector<8x16x8xf32> to vector<8x16x8xbf16>
    "tpu.trace_start"() <{level = 10 : i32, message = "bqd,bkd->bqk"}> : () -> ()
    %cst_26 = arith.constant dense<0.000000e+00> : vector<8x8x16xf32>
    %90 = tpu.matmul %49, %69, %cst_26 {dimension_numbers = #tpu.dot_dimension_numbers<[2], [2], [1], [1], [0, 0, 0, 1, 1, 1], [0], [0]>} : vector<8x8x8xbf16>, vector<8x16x8xbf16>, vector<8x8x16xf32> -> vector<8x8x16xf32>
    "tpu.trace_stop"() : () -> ()
    %cst_27 = arith.constant dense<0xFF800000> : vector<8x8xf32>
    %91 = vector.multi_reduction <maximumf>, %90, %cst_27 [2] : vector<8x8x16xf32> to vector<8x8xf32>
    %92 = vector.shape_cast %91 : vector<8x8xf32> to vector<8x8x1xf32>
    %93 = vector.broadcast %92 : vector<8x8x1xf32> to vector<8x8x16xf32>
    %94 = arith.subf %90, %93 : vector<8x8x16xf32>
    %95 = math.exp %94 : vector<8x8x16xf32>
    %cst_28 = arith.constant dense<0.000000e+00> : vector<8x8xf32>
    %96 = vector.multi_reduction <add>, %95, %cst_28 [2] : vector<8x8x16xf32> to vector<8x8xf32>
    %97 = vector.shape_cast %96 : vector<8x8xf32> to vector<8x8x1xf32>
    %98 = vector.broadcast %97 : vector<8x8x1xf32> to vector<8x8x16xf32>
    %99 = arith.divf %95, %98 : vector<8x8x16xf32>
    %100 = arith.truncf %99 : vector<8x8x16xf32> to vector<8x8x16xbf16>
    "tpu.trace_start"() <{level = 10 : i32, message = "bqk,bkd->bqd"}> : () -> ()
    %cst_29 = arith.constant dense<0.000000e+00> : vector<8x8x8xf32>
    %101 = tpu.matmul %100, %89, %cst_29 {dimension_numbers = #tpu.dot_dimension_numbers<[2], [1], [1], [2], [0, 0, 0, 1, 1, 2], [0], [0]>} : vector<8x8x16xbf16>, vector<8x16x8xbf16>, vector<8x8x8xf32> -> vector<8x8x8xf32>
    "tpu.trace_stop"() : () -> ()
    %102 = vector.extract_strided_slice %101 {offsets = [0, 0, 0], sizes = [1, 8, 8], strides = [1, 1, 1]} : vector<8x8x8xf32> to vector<1x8x8xf32>
    %103 = vector.shape_cast %102 : vector<1x8x8xf32> to vector<8x8xf32>
    %104 = vector.extract_strided_slice %101 {offsets = [1, 0, 0], sizes = [1, 8, 8], strides = [1, 1, 1]} : vector<8x8x8xf32> to vector<1x8x8xf32>
    %105 = vector.shape_cast %104 : vector<1x8x8xf32> to vector<8x8xf32>
    %106 = vector.extract_strided_slice %101 {offsets = [2, 0, 0], sizes = [1, 8, 8], strides = [1, 1, 1]} : vector<8x8x8xf32> to vector<1x8x8xf32>
    %107 = vector.shape_cast %106 : vector<1x8x8xf32> to vector<8x8xf32>
    %108 = vector.extract_strided_slice %101 {offsets = [3, 0, 0], sizes = [1, 8, 8], strides = [1, 1, 1]} : vector<8x8x8xf32> to vector<1x8x8xf32>
    %109 = vector.shape_cast %108 : vector<1x8x8xf32> to vector<8x8xf32>
    %110 = tpu.concatenate %103, %105, %107, %109 in 1 : vector<8x8xf32>, vector<8x8xf32>, vector<8x8xf32>, vector<8x8xf32> -> vector<8x32xf32>
    %111 = vector.extract_strided_slice %101 {offsets = [4, 0, 0], sizes = [1, 8, 8], strides = [1, 1, 1]} : vector<8x8x8xf32> to vector<1x8x8xf32>
    %112 = vector.shape_cast %111 : vector<1x8x8xf32> to vector<8x8xf32>
    %113 = vector.extract_strided_slice %101 {offsets = [5, 0, 0], sizes = [1, 8, 8], strides = [1, 1, 1]} : vector<8x8x8xf32> to vector<1x8x8xf32>
    %114 = vector.shape_cast %113 : vector<1x8x8xf32> to vector<8x8xf32>
    %115 = vector.extract_strided_slice %101 {offsets = [6, 0, 0], sizes = [1, 8, 8], strides = [1, 1, 1]} : vector<8x8x8xf32> to vector<1x8x8xf32>
    %116 = vector.shape_cast %115 : vector<1x8x8xf32> to vector<8x8xf32>
    %117 = vector.extract_strided_slice %101 {offsets = [7, 0, 0], sizes = [1, 8, 8], strides = [1, 1, 1]} : vector<8x8x8xf32> to vector<1x8x8xf32>
    %118 = vector.shape_cast %117 : vector<1x8x8xf32> to vector<8x8xf32>
    %119 = tpu.concatenate %112, %114, %116, %118 in 1 : vector<8x8xf32>, vector<8x8xf32>, vector<8x8xf32>, vector<8x8xf32> -> vector<8x32xf32>
    %120 = tpu.concatenate %110, %119 in 0 : vector<8x32xf32>, vector<8x32xf32> -> vector<16x32xf32>
    %121 = arith.truncf %120 : vector<16x32xf32> to vector<16x32xbf16>
    %c0_30 = arith.constant 0 : index
    %c0_31 = arith.constant 0 : index
    %122 = vector.load %arg6[%c0_30, %c0_31] : memref<32x32xbf16, #tpu.memory_space<vmem>>, vector<32x32xbf16>
    %cst_32 = arith.constant dense<0.000000e+00> : vector<16x32xf32>
    %123 = tpu.matmul %121, %122, %cst_32 {dimension_numbers = #tpu.dot_dimension_numbers<[1], [0], [0], [1], [0, 0, 1, 1], [], []>} : vector<16x32xbf16>, vector<32x32xbf16>, vector<16x32xf32> -> vector<16x32xf32>
    %c0_33 = arith.constant 0 : index
    %c0_34 = arith.constant 0 : index
    %124 = vector.load %arg7[%c0_33, %c0_34] : memref<1x32xf32, #tpu.memory_space<vmem>>, vector<1x32xf32>
    %125 = vector.broadcast %124 : vector<1x32xf32> to vector<16x32xf32>
    %126 = arith.addf %123, %125 : vector<16x32xf32>
    %127 = vector.shape_cast %126 : vector<16x32xf32> to vector<2x8x32xf32>
    %c0_35 = arith.constant 0 : index
    %c0_36 = arith.constant 0 : index
    %c0_37 = arith.constant 0 : index
    %128 = vector.load %arg8[%c0_35, %c0_36, %c0_37] : memref<2x8x32xf32, #tpu.memory_space<vmem>>, vector<2x8x32xf32>
    tpu.vector_store %arg8[%c0_35, %c0_36, %c0_37], %127 {strides = array<i32>} : memref<2x8x32xf32, #tpu.memory_space<vmem>>, vector<2x8x32xf32>,
    %129 = vector.extract_strided_slice %99 {offsets = [0, 0, 0], sizes = [1, 8, 16], strides = [1, 1, 1]} : vector<8x8x16xf32> to vector<1x8x16xf32>
    %130 = vector.shape_cast %129 : vector<1x8x16xf32> to vector<8x16xf32>
    %131 = vector.extract_strided_slice %99 {offsets = [1, 0, 0], sizes = [1, 8, 16], strides = [1, 1, 1]} : vector<8x8x16xf32> to vector<1x8x16xf32>
    %132 = vector.shape_cast %131 : vector<1x8x16xf32> to vector<8x16xf32>
    %133 = vector.extract_strided_slice %99 {offsets = [2, 0, 0], sizes = [1, 8, 16], strides = [1, 1, 1]} : vector<8x8x16xf32> to vector<1x8x16xf32>
    %134 = vector.shape_cast %133 : vector<1x8x16xf32> to vector<8x16xf32>
    %135 = vector.extract_strided_slice %99 {offsets = [3, 0, 0], sizes = [1, 8, 16], strides = [1, 1, 1]} : vector<8x8x16xf32> to vector<1x8x16xf32>
    %136 = vector.shape_cast %135 : vector<1x8x16xf32> to vector<8x16xf32>
    %137 = tpu.concatenate %130, %132, %134, %136 in 1 : vector<8x16xf32>, vector<8x16xf32>, vector<8x16xf32>, vector<8x16xf32> -> vector<8x64xf32>
    %138 = vector.extract_strided_slice %99 {offsets = [4, 0, 0], sizes = [1, 8, 16], strides = [1, 1, 1]} : vector<8x8x16xf32> to vector<1x8x16xf32>
    %139 = vector.shape_cast %138 : vector<1x8x16xf32> to vector<8x16xf32>
    %140 = vector.extract_strided_slice %99 {offsets = [5, 0, 0], sizes = [1, 8, 16], strides = [1, 1, 1]} : vector<8x8x16xf32> to vector<1x8x16xf32>
    %141 = vector.shape_cast %140 : vector<1x8x16xf32> to vector<8x16xf32>
    %142 = vector.extract_strided_slice %99 {offsets = [6, 0, 0], sizes = [1, 8, 16], strides = [1, 1, 1]} : vector<8x8x16xf32> to vector<1x8x16xf32>
    %143 = vector.shape_cast %142 : vector<1x8x16xf32> to vector<8x16xf32>
    %144 = vector.extract_strided_slice %99 {offsets = [7, 0, 0], sizes = [1, 8, 16], strides = [1, 1, 1]} : vector<8x8x16xf32> to vector<1x8x16xf32>
    %145 = vector.shape_cast %144 : vector<1x8x16xf32> to vector<8x16xf32>
    %146 = tpu.concatenate %139, %141, %143, %145 in 1 : vector<8x16xf32>, vector<8x16xf32>, vector<8x16xf32>, vector<8x16xf32> -> vector<8x64xf32>
    %147 = vector.shape_cast %137 : vector<8x64xf32> to vector<1x8x64xf32>
    %148 = vector.shape_cast %146 : vector<8x64xf32> to vector<1x8x64xf32>
    %149 = tpu.concatenate %147, %148 in 0 : vector<1x8x64xf32>, vector<1x8x64xf32> -> vector<2x8x64xf32>
    %c0_38 = arith.constant 0 : index
    %c0_39 = arith.constant 0 : index
    %c0_40 = arith.constant 0 : index
    %150 = vector.load %arg9[%c0_38, %c0_39, %c0_40] : memref<2x8x64xf32, #tpu.memory_space<vmem>>, vector<2x8x64xf32>
    tpu.vector_store %arg9[%c0_38, %c0_39, %c0_40], %149 {strides = array<i32>} : memref<2x8x64xf32, #tpu.memory_space<vmem>>, vector<2x8x64xf32>,
    return
  }
  func.func @transform_0(%arg0: i32) -> (i32, i32, i32) {
    %c0_i32 = arith.constant 0 : i32
    %c0_i32_0 = arith.constant 0 : i32
    %c0_i32_1 = arith.constant 0 : i32
    return %arg0, %c0_i32, %c0_i32_0 : i32, i32, i32
  }
  func.func @transform_1(%arg0: i32) -> (i32, i32, i32) {
    %c0_i32 = arith.constant 0 : i32
    %c0_i32_0 = arith.constant 0 : i32
    %c0_i32_1 = arith.constant 0 : i32
    return %arg0, %c0_i32, %c0_i32_0 : i32, i32, i32
  }
  func.func @transform_2(%arg0: i32) -> (i32, i32, i32) {
    %c0_i32 = arith.constant 0 : i32
    %c0_i32_0 = arith.constant 0 : i32
    %c0_i32_1 = arith.constant 0 : i32
    return %arg0, %c0_i32, %c0_i32_0 : i32, i32, i32
  }
  func.func @transform_3(%arg0: i32) -> (i32, i32, i32) {
    %c0_i32 = arith.constant 0 : i32
    %c0_i32_0 = arith.constant 0 : i32
    %c0_i32_1 = arith.constant 0 : i32
    %c0_i32_2 = arith.constant 0 : i32
    return %c0_i32, %c0_i32_0, %c0_i32_1 : i32, i32, i32
  }
  func.func @transform_4(%arg0: i32) -> (i32, i32, i32) {
    %c0_i32 = arith.constant 0 : i32
    %c0_i32_0 = arith.constant 0 : i32
    %c0_i32_1 = arith.constant 0 : i32
    %c0_i32_2 = arith.constant 0 : i32
    return %c0_i32, %c0_i32_0, %c0_i32_1 : i32, i32, i32
  }
  func.func @transform_5(%arg0: i32) -> (i32, i32) {
    %c0_i32 = arith.constant 0 : i32
    %c0_i32_0 = arith.constant 0 : i32
    %c0_i32_1 = arith.constant 0 : i32
    return %c0_i32, %c0_i32_0 : i32, i32
  }
  func.func @transform_6(%arg0: i32) -> (i32, i32) {
    %c0_i32 = arith.constant 0 : i32
    %c0_i32_0 = arith.constant 0 : i32
    %c0_i32_1 = arith.constant 0 : i32
    return %c0_i32, %c0_i32_0 : i32, i32
  }
  func.func @transform_7(%arg0: i32) -> (i32, i32, i32) {
    %c0_i32 = arith.constant 0 : i32
    %c0_i32_0 = arith.constant 0 : i32
    %c0_i32_1 = arith.constant 0 : i32
    return %arg0, %c0_i32, %c0_i32_0 : i32, i32, i32
  }
  func.func @transform_8(%arg0: i32) -> (i32, i32, i32) {
    %c0_i32 = arith.constant 0 : i32
    %c0_i32_0 = arith.constant 0 : i32
    %c0_i32_1 = arith.constant 0 : i32
    return %arg0, %c0_i32, %c0_i32_0 : i32, i32, i32
  }
}

</mosaic_0001>

<llo_original>
// kernel: tpu_custom_call.1
$region0: #{tpu_custom_call.1}
  #allocation0 [shape = 'u32[]', space=smem, size = 0x4, offset = 0x4, fixed_abs, tag = 'smem constant byte address 0x4 - core index']
  #allocation1 [shape = 'u32[144,128]{1,0:T(1,128)}', space=vmem, size = 0x12000, scoped, tag = 'internal scratch']
  %s0 = inlined_call_operand.hbm [shape: f32[2,8,32], index: 0, kind: input, shape index: {}]
  %s1 = inlined_call_operand.hbm [shape: f32[2,16,32], index: 1, kind: input, shape index: {}]
  %s2 = inlined_call_operand.hbm [shape: f32[2,16,32], index: 2, kind: input, shape index: {}]
  %s3 = inlined_call_operand.hbm [shape: bf16[3,32,32], index: 3, kind: input, shape index: {}]
  %s4 = inlined_call_operand.hbm [shape: f32[3,1,32], index: 4, kind: input, shape index: {}]
  %s5 = inlined_call_operand.vmem [shape: bf16[32,32], index: 5, kind: input, shape index: {}]
  %s6 = inlined_call_operand.vmem [shape: f32[1,32], index: 6, kind: input, shape index: {}]
  %s7 = inlined_call_operand.hbm [shape: f32[2,8,32], index: 7, kind: output, shape index: {0}]
  %s8 = inlined_call_operand.hbm [shape: f32[2,8,64], index: 8, kind: output, shape index: {1}]
  %9 = xla_tuple %s7, %s8
  %s10 = sld [smem:[#allocation0]]
  $region66: #{tpu_custom_call.1} parent=0
    _
  %s12 = ssub.s32 1, %s10
  %s13 = scalar_select 0, %s12, %s10
  $region1: #{tpu_custom_call.1} parent=0
    #allocation2 [shape = 'u8[8192]{0}', space=vmem, size = 0x2000, scoped, tag = 'input window, operand 0, single buffered']
    #allocation3 [shape = 's32[1]{0}', space=sflag, size = 0x4, scoped, tag = 'scoped memory for tpu_custom_call.1']
    #allocation4 [shape = 's32[1]{0}', space=sflag, size = 0x4, scoped, tag = 'scoped memory for tpu_custom_call.1']
    #allocation5 [shape = 'u8[16384]{0}', space=vmem, size = 0x4000, scoped, tag = 'input window, operand 1, single buffered']
    #allocation6 [shape = 's32[1]{0}', space=sflag, size = 0x4, scoped, tag = 'scoped memory for tpu_custom_call.1']
    #allocation7 [shape = 'u8[16384]{0}', space=vmem, size = 0x4000, scoped, tag = 'input window, operand 2, single buffered']
    #allocation8 [shape = 'u8[24576]{0}', space=vmem, size = 0x6000, scoped, tag = 'input window, operand 3, single buffered']
    #allocation9 [shape = 's32[1]{0}', space=sflag, size = 0x4, scoped, tag = 'scoped memory for tpu_custom_call.1']
    #allocation10 [shape = 'u8[1536]{0}', space=vmem, size = 0x800, scoped, tag = 'input window, operand 4, single buffered']
    #allocation11 [shape = 'u8[8192]{0}', space=vmem, size = 0x2000, scoped, tag = 'output window, operand 0, single buffered']
    #allocation12 [shape = 'u8[8192]{0}', space=vmem, size = 0x2000, scoped, tag = 'output window, operand 1, single buffered']
    #allocation13 [shape = 's32[1]{0}', space=sflag, size = 0x4, scoped, tag = 'scoped memory for tpu_custom_call.1']
    %14 = vsyncpa [#allocation3], 0
    %15 = vsyncpa [#allocation6], 0
    %16 = vsyncpa [#allocation9], 0
    %17 = vsyncpa [#allocation4], 0
    %18 = vsyncpa [#allocation13], 0
    // Predicated region
    $region2: #{tpu_custom_call.1} parent=1 // pred_check
      _
    $region3: #{tpu_custom_call.1} parent=1 // pred_check_branch
      %20 = sbr.rel (0) target = $region5
    $region4: #{tpu_custom_call.1} parent=1 // pred_region
      %s22 = ssub.s32 256, 256
      %23 = vsyncadd [#allocation3], %s22
      %s24 = sshll.u32 [#allocation2], 4
      %s25 = int_to_ptr.vmem [resolvable:$true] %s24
      %30 = dma.hbm_to_vmem [thread:$0]  %s0, 256, %s25, [#allocation3], 128, 128, 8
    $region5: #{tpu_custom_call.1} parent=1 // pred_fallthru
      _
    // Predicated region
    $region6: #{tpu_custom_call.1} parent=1 // pred_check
      _
    $region7: #{tpu_custom_call.1} parent=1 // pred_check_branch
      %32 = sbr.rel (0) target = $region9
    $region8: #{tpu_custom_call.1} parent=1 // pred_region
      %s34 = ssub.s32 512, 512
      %35 = vsyncadd [#allocation6], %s34
      %s36 = sshll.u32 [#allocation5], 4
      %s37 = int_to_ptr.vmem [resolvable:$true] %s36
      %42 = dma.hbm_to_vmem [thread:$0]  %s1, 512, %s37, [#allocation6], 128, 128, 8
    $region9: #{tpu_custom_call.1} parent=1 // pred_fallthru
      _
    // Predicated region
    $region10: #{tpu_custom_call.1} parent=1 // pred_check
      _
    $region11: #{tpu_custom_call.1} parent=1 // pred_check_branch
      %44 = sbr.rel (0) target = $region13
    $region12: #{tpu_custom_call.1} parent=1 // pred_region
      %s46 = ssub.s32 512, 512
      %47 = vsyncadd [#allocation6], %s46
      %s48 = sshll.u32 [#allocation7], 4
      %s49 = int_to_ptr.vmem [resolvable:$true] %s48
      %54 = dma.hbm_to_vmem [thread:$0]  %s2, 512, %s49, [#allocation6], 128, 128, 8
    $region13: #{tpu_custom_call.1} parent=1 // pred_fallthru
      _
    // Predicated region
    $region14: #{tpu_custom_call.1} parent=1 // pred_check
      _
    $region15: #{tpu_custom_call.1} parent=1 // pred_check_branch
      %56 = sbr.rel (0) target = $region17
    $region16: #{tpu_custom_call.1} parent=1 // pred_region
      %s58 = ssub.s32 768, 768
      %59 = vsyncadd [#allocation9], %s58
      %s60 = sshll.u32 [#allocation8], 4
      %s61 = int_to_ptr.vmem [resolvable:$true] %s60
      %66 = dma.hbm_to_vmem [thread:$0]  %s3, 768, %s61, [#allocation9], 64, 64, 4
    $region17: #{tpu_custom_call.1} parent=1 // pred_fallthru
      _
    // Predicated region
    $region18: #{tpu_custom_call.1} parent=1 // pred_check
      _
    $region19: #{tpu_custom_call.1} parent=1 // pred_check_branch
      %68 = sbr.rel (0) target = $region21
    $region20: #{tpu_custom_call.1} parent=1 // pred_region
      %s70 = ssub.s32 48, 48
      %71 = vsyncadd [#allocation9], %s70
      %s72 = sshll.u32 [#allocation10], 4
      %s73 = int_to_ptr.vmem [resolvable:$true] %s72
      %78 = dma.hbm_to_vmem [thread:$0]  %s4, 48, %s73, [#allocation9], 16, 16, 1
    $region21: #{tpu_custom_call.1} parent=1 // pred_fallthru
      _
    // Predicated region
    $region22: #{tpu_custom_call.1} parent=1 // pred_check
      _
    $region23: #{tpu_custom_call.1} parent=1 // pred_check_branch
      %80 = sbr.rel (0) target = $region25
    $region24: #{tpu_custom_call.1} parent=1 // pred_region
      _
    $region25: #{tpu_custom_call.1} parent=1 // pred_fallthru
      _
    // Predicated region
    $region26: #{tpu_custom_call.1} parent=1 // pred_check
      _
    $region27: #{tpu_custom_call.1} parent=1 // pred_check_branch
      %82 = sbr.rel (0) target = $region29
    $region28: #{tpu_custom_call.1} parent=1 // pred_region
      _
    $region29: #{tpu_custom_call.1} parent=1 // pred_fallthru
      _
    // Predicated region
    $region30: #{tpu_custom_call.1} parent=1 // pred_check
      _
    $region31: #{tpu_custom_call.1} parent=1 // pred_check_branch
      %84 = sbr.rel (0) target = $region33
    $region32: #{tpu_custom_call.1} parent=1 // pred_region
      %85 = dma.done [#allocation3], 256
    $region33: #{tpu_custom_call.1} parent=1 // pred_fallthru
      _
    // Predicated region
    $region34: #{tpu_custom_call.1} parent=1 // pred_check
      _
    $region35: #{tpu_custom_call.1} parent=1 // pred_check_branch
      %87 = sbr.rel (0) target = $region37
    $region36: #{tpu_custom_call.1} parent=1 // pred_region
      %88 = dma.done [#allocation6], 512
    $region37: #{tpu_custom_call.1} parent=1 // pred_fallthru
      _
    // Predicated region
    $region38: #{tpu_custom_call.1} parent=1 // pred_check
      _
    $region39: #{tpu_custom_call.1} parent=1 // pred_check_branch
      %90 = sbr.rel (0) target = $region41
    $region40: #{tpu_custom_call.1} parent=1 // pred_region
      %91 = dma.done [#allocation6], 512
    $region41: #{tpu_custom_call.1} parent=1 // pred_fallthru
      _
    // Predicated region
    $region42: #{tpu_custom_call.1} parent=1 // pred_check
      _
    $region43: #{tpu_custom_call.1} parent=1 // pred_check_branch
      %93 = sbr.rel (0) target = $region45
    $region44: #{tpu_custom_call.1} parent=1 // pred_region
      %94 = dma.done [#allocation9], 768
    $region45: #{tpu_custom_call.1} parent=1 // pred_fallthru
      _
    // Predicated region
    $region46: #{tpu_custom_call.1} parent=1 // pred_check
      _
    $region47: #{tpu_custom_call.1} parent=1 // pred_check_branch
      %96 = sbr.rel (0) target = $region49
    $region48: #{tpu_custom_call.1} parent=1 // pred_region
      %97 = dma.done [#allocation9], 48
    $region49: #{tpu_custom_call.1} parent=1 // pred_fallthru
      _
    %v99 = vld [vmem:[#allocation2] sm:$0xff]
    %v100 = vld [vmem:[#allocation2 + $0x8] sm:$0xff]
    %v101 = vpack.c.bf16 %v100, %v99
    %v102 = vld [vmem:[#allocation5] sm:$0xff]
    %v103 = vld [vmem:[#allocation5 + $0x8] sm:$0xff]
    %v104 = vld [vmem:[#allocation5 + $0x10] sm:$0xff]
    %v105 = vld [vmem:[#allocation5 + $0x18] sm:$0xff]
    %v106 = vpack.c.bf16 %v103, %v102
    %v107 = vpack.c.bf16 %v105, %v104
    %v108 = vld [vmem:[#allocation7] sm:$0xff]
    %v109 = vld [vmem:[#allocation7 + $0x8] sm:$0xff]
    %v110 = vld [vmem:[#allocation7 + $0x10] sm:$0xff]
    %v111 = vld [vmem:[#allocation7 + $0x18] sm:$0xff]
    %v112 = vpack.c.bf16 %v109, %v108
    %v113 = vpack.c.bf16 %v111, %v110
    %v114 = vld [vmem:[#allocation8] sm:$0xf]
    %v115 = vld [vmem:[#allocation8 + $0x4] sm:$0xf]
    %v116 = vld [vmem:[#allocation8 + $0x8] sm:$0xf]
    %v117 = vld [vmem:[#allocation8 + $0xc] sm:$0xf]
    %v118 = vld [vmem:[#allocation10] sm:$0x1]
    %v120 = vlaneseq
    %v121 = vshrl.u32 %v120, 7
    %v122 = vsub.s32 0, %v121
    %v123 = vrot.slane %v118, %v122
    %v129 = vunpack.c.l.b16 %v114
    %v130 = vunpack.c.l.b16 %v115
    %v131 = vunpack.c.l.b16 %v116
    %v132 = vunpack.c.l.b16 %v117
    %v133 = vpack.c.b16 %v130, %v129
    %v134 = vpack.c.b16 %v132, %v131
    %vm137 = vcmask 261120
    %v139 = vsel %vm137, %v101, 0
    %141 = vmatprep.subr.bf16.mxu0 0
    %142 = vmatpush1.bf16.msra.mxu0 %v133
    %143 = vmatprep.subr.bf16.mxu0 0
    %144 = vmatpush1.bf16.msra.mxu0 %v134
    %145 = vmatprep.subr.bf16.mxu0 0
    %146 = vmatpush1.bf16.msra.mxu0 0
    %147 = vmatprep.subr.bf16.mxu0 0
    %148 = vmatpush1.bf16.msra.mxu0 0
    %149 = vmatprep.subr.bf16.mxu0 0
    %150 = vmatpush1.bf16.msra.mxu0 0
    %151 = vmatprep.subr.bf16.mxu0 0
    %152 = vmatpush1.bf16.msra.mxu0 0
    %153 = vmatprep.subr.bf16.mxu0 0
    %154 = vmatpush1.bf16.msra.mxu0 0
    %155 = vmatprep.subr.bf16.mxu0 0
    %156 = vmatpush1.bf16.msra.mxu0 0
    %157 = vmatprep.subr.bf16.mxu0 0
    %158 = vmatpush1.bf16.msra.mxu0 0
    %159 = vmatprep.subr.bf16.mxu0 0
    %160 = vmatpush1.bf16.msra.mxu0 0
    %161 = vmatprep.subr.bf16.mxu0 0
    %162 = vmatpush1.bf16.msra.mxu0 0
    %163 = vmatprep.subr.bf16.mxu0 0
    %164 = vmatpush1.bf16.msra.mxu0 0
    %165 = vmatprep.subr.bf16.mxu0 0
    %166 = vmatpush1.bf16.msra.mxu0 0
    %167 = vmatprep.subr.bf16.mxu0 0
    %168 = vmatpush1.bf16.msra.mxu0 0
    %169 = vmatprep.subr.bf16.mxu0 0
    %170 = vmatpush1.bf16.msra.mxu0 0
    %171 = vmatprep.subr.bf16.mxu0 0
    %172 = vmatpush1.bf16.msra.mxu0 0
    %173 = vmatprep.mubr.bf16.mxu0 0
    %174 = vmatmul.mubr.bf16.gmra.mrb[0].mxu0 %v139
    %v175 = vpop.f32.mrb[0].mxu0
    %v176 = vadd.f32 %v123, %v175
    %v177 = vpop.f32.mrb[0].mxu0
    %v178 = vpop.f32.mrb[0].mxu0
    %v179 = vadd.f32 %v123, %v178
    %v180 = vpop.f32.mrb[0].mxu0
    %181 = vdwg.mxu0
    %s182 = scalar_lea.vmem [#allocation8], 16
    %v183 = vld [vmem:[%s182] sm:$0xf]
    %v184 = vld [vmem:[%s182 + $0x4] sm:$0xf]
    %v185 = vld [vmem:[%s182 + $0x8] sm:$0xf]
    %v186 = vld [vmem:[%s182 + $0xc] sm:$0xf]
    %s187 = scalar_lea.vmem [#allocation10], 1
    %v188 = vld [vmem:[%s187] sm:$0x1]
    %v190 = vlaneseq
    %v191 = vshrl.u32 %v190, 7
    %v192 = vsub.s32 0, %v191
    %v193 = vrot.slane %v188, %v192
    %v199 = vunpack.c.l.b16 %v183
    %v200 = vunpack.c.l.b16 %v184
    %v201 = vunpack.c.l.b16 %v185
    %v202 = vunpack.c.l.b16 %v186
    %v203 = vpack.c.b16 %v200, %v199
    %v204 = vpack.c.b16 %v202, %v201
    %v208 = vsel %vm137, %v106, 0
    %v211 = vsel %vm137, %v107, 0
    %213 = vmatprep.subr.bf16.mxu0 0
    %214 = vmatpush1.bf16.msra.mxu0 %v203
    %215 = vmatprep.subr.bf16.mxu0 0
    %216 = vmatpush1.bf16.msra.mxu0 %v204
    %217 = vmatprep.subr.bf16.mxu0 0
    %218 = vmatpush1.bf16.msra.mxu0 0
    %219 = vmatprep.subr.bf16.mxu0 0
    %220 = vmatpush1.bf16.msra.mxu0 0
    %221 = vmatprep.subr.bf16.mxu0 0
    %222 = vmatpush1.bf16.msra.mxu0 0
    %223 = vmatprep.subr.bf16.mxu0 0
    %224 = vmatpush1.bf16.msra.mxu0 0
    %225 = vmatprep.subr.bf16.mxu0 0
    %226 = vmatpush1.bf16.msra.mxu0 0
    %227 = vmatprep.subr.bf16.mxu0 0
    %228 = vmatpush1.bf16.msra.mxu0 0
    %229 = vmatprep.subr.bf16.mxu0 0
    %230 = vmatpush1.bf16.msra.mxu0 0
    %231 = vmatprep.subr.bf16.mxu0 0
    %232 = vmatpush1.bf16.msra.mxu0 0
    %233 = vmatprep.subr.bf16.mxu0 0
    %234 = vmatpush1.bf16.msra.mxu0 0
    %235 = vmatprep.subr.bf16.mxu0 0
    %236 = vmatpush1.bf16.msra.mxu0 0
    %237 = vmatprep.subr.bf16.mxu0 0
    %238 = vmatpush1.bf16.msra.mxu0 0
    %239 = vmatprep.subr.bf16.mxu0 0
    %240 = vmatpush1.bf16.msra.mxu0 0
    %241 = vmatprep.subr.bf16.mxu0 0
    %242 = vmatpush1.bf16.msra.mxu0 0
    %243 = vmatprep.subr.bf16.mxu0 0
    %244 = vmatpush1.bf16.msra.mxu0 0
    %245 = vmatprep.mubr.bf16.mxu0 0
    %246 = vmatmul.mubr.bf16.gmra.mrb[0].mxu0 %v208
    %v247 = vpop.f32.mrb[0].mxu0
    %v248 = vadd.f32 %v193, %v247
    %v249 = vpop.f32.mrb[0].mxu0
    %v250 = vpop.f32.mrb[0].mxu0
    %v251 = vadd.f32 %v193, %v250
    %v252 = vpop.f32.mrb[0].mxu0
    %253 = vmatprep.mubr.bf16.mxu0 0
    %254 = vmatmul.mubr.bf16.gmra.mrb[0].mxu0 %v211
    %v255 = vpop.f32.mrb[0].mxu0
    %v256 = vadd.f32 %v193, %v255
    %v257 = vpop.f32.mrb[0].mxu0
    %v258 = vpop.f32.mrb[0].mxu0
    %v259 = vadd.f32 %v193, %v258
    %v260 = vpop.f32.mrb[0].mxu0
    %261 = vdwg.mxu0
    %s262 = scalar_lea.vmem [#allocation8], 32
    %v263 = vld [vmem:[%s262] sm:$0xf]
    %v264 = vld [vmem:[%s262 + $0x4] sm:$0xf]
    %v265 = vld [vmem:[%s262 + $0x8] sm:$0xf]
    %v266 = vld [vmem:[%s262 + $0xc] sm:$0xf]
    %s267 = scalar_lea.vmem [#allocation10], 2
    %v268 = vld [vmem:[%s267] sm:$0x1]
    %v270 = vlaneseq
    %v271 = vshrl.u32 %v270, 7
    %v272 = vsub.s32 0, %v271
    %v273 = vrot.slane %v268, %v272
    %v279 = vunpack.c.l.b16 %v263
    %v280 = vunpack.c.l.b16 %v264
    %v281 = vunpack.c.l.b16 %v265
    %v282 = vunpack.c.l.b16 %v266
    %v283 = vpack.c.b16 %v280, %v279
    %v284 = vpack.c.b16 %v282, %v281
    %v288 = vsel %vm137, %v112, 0
    %v291 = vsel %vm137, %v113, 0
    %293 = vmatprep.subr.bf16.mxu0 0
    %294 = vmatpush1.bf16.msra.mxu0 %v283
    %295 = vmatprep.subr.bf16.mxu0 0
    %296 = vmatpush1.bf16.msra.mxu0 %v284
    %297 = vmatprep.subr.bf16.mxu0 0
    %298 = vmatpush1.bf16.msra.mxu0 0
    %299 = vmatprep.subr.bf16.mxu0 0
    %300 = vmatpush1.bf16.msra.mxu0 0
    %301 = vmatprep.subr.bf16.mxu0 0
    %302 = vmatpush1.bf16.msra.mxu0 0
    %303 = vmatprep.subr.bf16.mxu0 0
    %304 = vmatpush1.bf16.msra.mxu0 0
    %305 = vmatprep.subr.bf16.mxu0 0
    %306 = vmatpush1.bf16.msra.mxu0 0
    %307 = vmatprep.subr.bf16.mxu0 0
    %308 = vmatpush1.bf16.msra.mxu0 0
    %309 = vmatprep.subr.bf16.mxu0 0
    %310 = vmatpush1.bf16.msra.mxu0 0
    %311 = vmatprep.subr.bf16.mxu0 0
    %312 = vmatpush1.bf16.msra.mxu0 0
    %313 = vmatprep.subr.bf16.mxu0 0
    %314 = vmatpush1.bf16.msra.mxu0 0
    %315 = vmatprep.subr.bf16.mxu0 0
    %316 = vmatpush1.bf16.msra.mxu0 0
    %317 = vmatprep.subr.bf16.mxu0 0
    %318 = vmatpush1.bf16.msra.mxu0 0
    %319 = vmatprep.subr.bf16.mxu0 0
    %320 = vmatpush1.bf16.msra.mxu0 0
    %321 = vmatprep.subr.bf16.mxu0 0
    %322 = vmatpush1.bf16.msra.mxu0 0
    %323 = vmatprep.subr.bf16.mxu0 0
    %324 = vmatpush1.bf16.msra.mxu0 0
    %325 = vmatprep.mubr.bf16.mxu0 0
    %326 = vmatmul.mubr.bf16.gmra.mrb[0].mxu0 %v288
    %v327 = vpop.f32.mrb[0].mxu0
    %v328 = vadd.f32 %v273, %v327
    %v329 = vpop.f32.mrb[0].mxu0
    %v330 = vpop.f32.mrb[0].mxu0
    %v331 = vadd.f32 %v273, %v330
    %v332 = vpop.f32.mrb[0].mxu0
    %333 = vmatprep.mubr.bf16.mxu0 0
    %334 = vmatmul.mubr.bf16.gmra.mrb[0].mxu0 %v291
    %v335 = vpop.f32.mrb[0].mxu0
    %v336 = vadd.f32 %v273, %v335
    %v337 = vpop.f32.mrb[0].mxu0
    %v338 = vpop.f32.mrb[0].mxu0
    %v339 = vadd.f32 %v273, %v338
    %v340 = vpop.f32.mrb[0].mxu0
    %341 = vdwg.mxu0
    %343 = vrot.lane.b32.xlu0 %v176, 120
    %v344 = vpop.permute.xlu0 %343
    %346 = vrot.lane.b32.xlu0 %v176, 112
    %v347 = vpop.permute.xlu0 %346
    %349 = vrot.lane.b32.xlu0 %v176, 104
    %v350 = vpop.permute.xlu0 %349
    %353 = vrot.lane.b32.xlu0 %v179, 120
    %v354 = vpop.permute.xlu0 %353
    %356 = vrot.lane.b32.xlu0 %v179, 112
    %v357 = vpop.permute.xlu0 %356
    %359 = vrot.lane.b32.xlu0 %v179, 104
    %v360 = vpop.permute.xlu0 %359
    %v362 = vpack.c.bf16 %v176, %v176
    %v363 = vpack.c.bf16 %v344, %v344
    %v364 = vpack.c.bf16 %v347, %v347
    %v365 = vpack.c.bf16 %v350, %v350
    %v366 = vpack.c.bf16 %v179, %v179
    %v367 = vpack.c.bf16 %v354, %v354
    %v368 = vpack.c.bf16 %v357, %v357
    %v369 = vpack.c.bf16 %v360, %v360
    %372 = vrot.lane.b32.xlu0 %v248, 120
    %v373 = vpop.permute.xlu0 %372
    %374 = vrot.lane.b32.xlu0 %v251, 120
    %v375 = vpop.permute.xlu0 %374
    %378 = vrot.lane.b32.xlu0 %v248, 112
    %v379 = vpop.permute.xlu0 %378
    %380 = vrot.lane.b32.xlu0 %v251, 112
    %v381 = vpop.permute.xlu0 %380
    %384 = vrot.lane.b32.xlu0 %v248, 104
    %v385 = vpop.permute.xlu0 %384
    %386 = vrot.lane.b32.xlu0 %v251, 104
    %v387 = vpop.permute.xlu0 %386
    %392 = vrot.lane.b32.xlu0 %v256, 120
    %v393 = vpop.permute.xlu0 %392
    %394 = vrot.lane.b32.xlu0 %v259, 120
    %v395 = vpop.permute.xlu0 %394
    %398 = vrot.lane.b32.xlu0 %v256, 112
    %v399 = vpop.permute.xlu0 %398
    %400 = vrot.lane.b32.xlu0 %v259, 112
    %v401 = vpop.permute.xlu0 %400
    %404 = vrot.lane.b32.xlu0 %v256, 104
    %v405 = vpop.permute.xlu0 %404
    %406 = vrot.lane.b32.xlu0 %v259, 104
    %v407 = vpop.permute.xlu0 %406
    %v410 = vpack.c.bf16 %v251, %v248
    %v411 = vpack.c.bf16 %v375, %v373
    %v412 = vpack.c.bf16 %v381, %v379
    %v413 = vpack.c.bf16 %v387, %v385
    %v414 = vpack.c.bf16 %v259, %v256
    %v415 = vpack.c.bf16 %v395, %v393
    %v416 = vpack.c.bf16 %v401, %v399
    %v417 = vpack.c.bf16 %v407, %v405
    %420 = vrot.lane.b32.xlu0 %v328, 120
    %v421 = vpop.permute.xlu0 %420
    %422 = vrot.lane.b32.xlu0 %v331, 120
    %v423 = vpop.permute.xlu0 %422
    %426 = vrot.lane.b32.xlu0 %v328, 112
    %v427 = vpop.permute.xlu0 %426
    %428 = vrot.lane.b32.xlu0 %v331, 112
    %v429 = vpop.permute.xlu0 %428
    %432 = vrot.lane.b32.xlu0 %v328, 104
    %v433 = vpop.permute.xlu0 %432
    %434 = vrot.lane.b32.xlu0 %v331, 104
    %v435 = vpop.permute.xlu0 %434
    %440 = vrot.lane.b32.xlu0 %v336, 120
    %v441 = vpop.permute.xlu0 %440
    %442 = vrot.lane.b32.xlu0 %v339, 120
    %v443 = vpop.permute.xlu0 %442
    %446 = vrot.lane.b32.xlu0 %v336, 112
    %v447 = vpop.permute.xlu0 %446
    %448 = vrot.lane.b32.xlu0 %v339, 112
    %v449 = vpop.permute.xlu0 %448
    %452 = vrot.lane.b32.xlu0 %v336, 104
    %v453 = vpop.permute.xlu0 %452
    %454 = vrot.lane.b32.xlu0 %v339, 104
    %v455 = vpop.permute.xlu0 %454
    %v458 = vpack.c.bf16 %v331, %v328
    %v459 = vpack.c.bf16 %v423, %v421
    %v460 = vpack.c.bf16 %v429, %v427
    %v461 = vpack.c.bf16 %v435, %v433
    %v462 = vpack.c.bf16 %v339, %v336
    %v463 = vpack.c.bf16 %v443, %v441
    %v464 = vpack.c.bf16 %v449, %v447
    %v465 = vpack.c.bf16 %v455, %v453
    %vm466 = vcmask 64512
    %v468 = vsel %vm466, %v362, 0
    %v471 = vsel %vm466, %v410, 0
    %473 = vmatprep.subr.bf16.mxu0 0
    %474 = vmatpush1.bf16.xpose.msra.mxu0 %v471
    %475 = vmatprep.subr.bf16.mxu0 0
    %476 = vmatpush1.bf16.xpose.msra.mxu0 0
    %477 = vmatprep.subr.bf16.mxu0 0
    %478 = vmatpush1.bf16.xpose.msra.mxu0 0
    %479 = vmatprep.subr.bf16.mxu0 0
    %480 = vmatpush1.bf16.xpose.msra.mxu0 0
    %481 = vmatprep.subr.bf16.mxu0 0
    %482 = vmatpush1.bf16.xpose.msra.mxu0 0
    %483 = vmatprep.subr.bf16.mxu0 0
    %484 = vmatpush1.bf16.xpose.msra.mxu0 0
    %485 = vmatprep.subr.bf16.mxu0 0
    %486 = vmatpush1.bf16.xpose.msra.mxu0 0
    %487 = vmatprep.subr.bf16.mxu0 0
    %488 = vmatpush1.bf16.xpose.msra.mxu0 0
    %489 = vmatprep.subr.bf16.mxu0 0
    %490 = vmatpush1.bf16.xpose.msra.mxu0 0
    %491 = vmatprep.subr.bf16.mxu0 0
    %492 = vmatpush1.bf16.xpose.msra.mxu0 0
    %493 = vmatprep.subr.bf16.mxu0 0
    %494 = vmatpush1.bf16.xpose.msra.mxu0 0
    %495 = vmatprep.subr.bf16.mxu0 0
    %496 = vmatpush1.bf16.xpose.msra.mxu0 0
    %497 = vmatprep.subr.bf16.mxu0 0
    %498 = vmatpush1.bf16.xpose.msra.mxu0 0
    %499 = vmatprep.subr.bf16.mxu0 0
    %500 = vmatpush1.bf16.xpose.msra.mxu0 0
    %501 = vmatprep.subr.bf16.mxu0 0
    %502 = vmatpush1.bf16.xpose.msra.mxu0 0
    %503 = vmatprep.subr.bf16.mxu0 0
    %504 = vmatpush1.bf16.xpose.msra.mxu0 0
    %505 = vmatprep.mubr.bf16.mxu0 0
    %506 = vmatmul.mubr.bf16.gmra.mrb[0].mxu0 %v468
    %v507 = vpop.f32.mrb[0].mxu0
    %v508 = vadd.f32 0.0, %v507
    %v509 = vpop.f32.mrb[0].mxu0
    %v510 = vpop.f32.mrb[0].mxu0
    %v511 = vpop.f32.mrb[0].mxu0
    %512 = vdwg.mxu0
    %v514 = vsel %vm466, %v363, 0
    %v517 = vsel %vm466, %v411, 0
    %519 = vmatprep.subr.bf16.mxu0 0
    %520 = vmatpush1.bf16.xpose.msra.mxu0 %v517
    %521 = vmatprep.subr.bf16.mxu0 0
    %522 = vmatpush1.bf16.xpose.msra.mxu0 0
    %523 = vmatprep.subr.bf16.mxu0 0
    %524 = vmatpush1.bf16.xpose.msra.mxu0 0
    %525 = vmatprep.subr.bf16.mxu0 0
    %526 = vmatpush1.bf16.xpose.msra.mxu0 0
    %527 = vmatprep.subr.bf16.mxu0 0
    %528 = vmatpush1.bf16.xpose.msra.mxu0 0
    %529 = vmatprep.subr.bf16.mxu0 0
    %530 = vmatpush1.bf16.xpose.msra.mxu0 0
    %531 = vmatprep.subr.bf16.mxu0 0
    %532 = vmatpush1.bf16.xpose.msra.mxu0 0
    %533 = vmatprep.subr.bf16.mxu0 0
    %534 = vmatpush1.bf16.xpose.msra.mxu0 0
    %535 = vmatprep.subr.bf16.mxu0 0
    %536 = vmatpush1.bf16.xpose.msra.mxu0 0
    %537 = vmatprep.subr.bf16.mxu0 0
    %538 = vmatpush1.bf16.xpose.msra.mxu0 0
    %539 = vmatprep.subr.bf16.mxu0 0
    %540 = vmatpush1.bf16.xpose.msra.mxu0 0
    %541 = vmatprep.subr.bf16.mxu0 0
    %542 = vmatpush1.bf16.xpose.msra.mxu0 0
    %543 = vmatprep.subr.bf16.mxu0 0
    %544 = vmatpush1.bf16.xpose.msra.mxu0 0
    %545 = vmatprep.subr.bf16.mxu0 0
    %546 = vmatpush1.bf16.xpose.msra.mxu0 0
    %547 = vmatprep.subr.bf16.mxu0 0
    %548 = vmatpush1.bf16.xpose.msra.mxu0 0
    %549 = vmatprep.subr.bf16.mxu0 0
    %550 = vmatpush1.bf16.xpose.msra.mxu0 0
    %551 = vmatprep.mubr.bf16.mxu0 0
    %552 = vmatmul.mubr.bf16.gmra.mrb[0].mxu0 %v514
    %v553 = vpop.f32.mrb[0].mxu0
    %v554 = vadd.f32 0.0, %v553
    %v555 = vpop.f32.mrb[0].mxu0
    %v556 = vpop.f32.mrb[0].mxu0
    %v557 = vpop.f32.mrb[0].mxu0
    %558 = vdwg.mxu0
    %v560 = vsel %vm466, %v364, 0
    %v563 = vsel %vm466, %v412, 0
    %565 = vmatprep.subr.bf16.mxu0 0
    %566 = vmatpush1.bf16.xpose.msra.mxu0 %v563
    %567 = vmatprep.subr.bf16.mxu0 0
    %568 = vmatpush1.bf16.xpose.msra.mxu0 0
    %569 = vmatprep.subr.bf16.mxu0 0
    %570 = vmatpush1.bf16.xpose.msra.mxu0 0
    %571 = vmatprep.subr.bf16.mxu0 0
    %572 = vmatpush1.bf16.xpose.msra.mxu0 0
    %573 = vmatprep.subr.bf16.mxu0 0
    %574 = vmatpush1.bf16.xpose.msra.mxu0 0
    %575 = vmatprep.subr.bf16.mxu0 0
    %576 = vmatpush1.bf16.xpose.msra.mxu0 0
    %577 = vmatprep.subr.bf16.mxu0 0
    %578 = vmatpush1.bf16.xpose.msra.mxu0 0
    %579 = vmatprep.subr.bf16.mxu0 0
    %580 = vmatpush1.bf16.xpose.msra.mxu0 0
    %581 = vmatprep.subr.bf16.mxu0 0
    %582 = vmatpush1.bf16.xpose.msra.mxu0 0
    %583 = vmatprep.subr.bf16.mxu0 0
    %584 = vmatpush1.bf16.xpose.msra.mxu0 0
    %585 = vmatprep.subr.bf16.mxu0 0
    %586 = vmatpush1.bf16.xpose.msra.mxu0 0
    %587 = vmatprep.subr.bf16.mxu0 0
    %588 = vmatpush1.bf16.xpose.msra.mxu0 0
    %589 = vmatprep.subr.bf16.mxu0 0
    %590 = vmatpush1.bf16.xpose.msra.mxu0 0
    %591 = vmatprep.subr.bf16.mxu0 0
    %592 = vmatpush1.bf16.xpose.msra.mxu0 0
    %593 = vmatprep.subr.bf16.mxu0 0
    %594 = vmatpush1.bf16.xpose.msra.mxu0 0
    %595 = vmatprep.subr.bf16.mxu0 0
    %596 = vmatpush1.bf16.xpose.msra.mxu0 0
    %597 = vmatprep.mubr.bf16.mxu0 0
    %598 = vmatmul.mubr.bf16.gmra.mrb[0].mxu0 %v560
    %v599 = vpop.f32.mrb[0].mxu0
    %v600 = vadd.f32 0.0, %v599
    %v601 = vpop.f32.mrb[0].mxu0
    %v602 = vpop.f32.mrb[0].mxu0
    %v603 = vpop.f32.mrb[0].mxu0
    %604 = vdwg.mxu0
    %v606 = vsel %vm466, %v365, 0
    %v609 = vsel %vm466, %v413, 0
    %611 = vmatprep.subr.bf16.mxu0 0
    %612 = vmatpush1.bf16.xpose.msra.mxu0 %v609
    %613 = vmatprep.subr.bf16.mxu0 0
    %614 = vmatpush1.bf16.xpose.msra.mxu0 0
    %615 = vmatprep.subr.bf16.mxu0 0
    %616 = vmatpush1.bf16.xpose.msra.mxu0 0
    %617 = vmatprep.subr.bf16.mxu0 0
    %618 = vmatpush1.bf16.xpose.msra.mxu0 0
    %619 = vmatprep.subr.bf16.mxu0 0
    %620 = vmatpush1.bf16.xpose.msra.mxu0 0
    %621 = vmatprep.subr.bf16.mxu0 0
    %622 = vmatpush1.bf16.xpose.msra.mxu0 0
    %623 = vmatprep.subr.bf16.mxu0 0
    %624 = vmatpush1.bf16.xpose.msra.mxu0 0
    %625 = vmatprep.subr.bf16.mxu0 0
    %626 = vmatpush1.bf16.xpose.msra.mxu0 0
    %627 = vmatprep.subr.bf16.mxu0 0
    %628 = vmatpush1.bf16.xpose.msra.mxu0 0
    %629 = vmatprep.subr.bf16.mxu0 0
    %630 = vmatpush1.bf16.xpose.msra.mxu0 0
    %631 = vmatprep.subr.bf16.mxu0 0
    %632 = vmatpush1.bf16.xpose.msra.mxu0 0
    %633 = vmatprep.subr.bf16.mxu0 0
    %634 = vmatpush1.bf16.xpose.msra.mxu0 0
    %635 = vmatprep.subr.bf16.mxu0 0
    %636 = vmatpush1.bf16.xpose.msra.mxu0 0
    %637 = vmatprep.subr.bf16.mxu0 0
    %638 = vmatpush1.bf16.xpose.msra.mxu0 0
    %639 = vmatprep.subr.bf16.mxu0 0
    %640 = vmatpush1.bf16.xpose.msra.mxu0 0
    %641 = vmatprep.subr.bf16.mxu0 0
    %642 = vmatpush1.bf16.xpose.msra.mxu0 0
    %643 = vmatprep.mubr.bf16.mxu0 0
    %644 = vmatmul.mubr.bf16.gmra.mrb[0].mxu0 %v606
    %v645 = vpop.f32.mrb[0].mxu0
    %v646 = vadd.f32 0.0, %v645
    %v647 = vpop.f32.mrb[0].mxu0
    %v648 = vpop.f32.mrb[0].mxu0
    %v649 = vpop.f32.mrb[0].mxu0
    %650 = vdwg.mxu0
    %v652 = vsel %vm466, %v366, 0
    %v655 = vsel %vm466, %v414, 0
    %657 = vmatprep.subr.bf16.mxu0 0
    %658 = vmatpush1.bf16.xpose.msra.mxu0 %v655
    %659 = vmatprep.subr.bf16.mxu0 0
    %660 = vmatpush1.bf16.xpose.msra.mxu0 0
    %661 = vmatprep.subr.bf16.mxu0 0
    %662 = vmatpush1.bf16.xpose.msra.mxu0 0
    %663 = vmatprep.subr.bf16.mxu0 0
    %664 = vmatpush1.bf16.xpose.msra.mxu0 0
    %665 = vmatprep.subr.bf16.mxu0 0
    %666 = vmatpush1.bf16.xpose.msra.mxu0 0
    %667 = vmatprep.subr.bf16.mxu0 0
    %668 = vmatpush1.bf16.xpose.msra.mxu0 0
    %669 = vmatprep.subr.bf16.mxu0 0
    %670 = vmatpush1.bf16.xpose.msra.mxu0 0
    %671 = vmatprep.subr.bf16.mxu0 0
    %672 = vmatpush1.bf16.xpose.msra.mxu0 0
    %673 = vmatprep.subr.bf16.mxu0 0
    %674 = vmatpush1.bf16.xpose.msra.mxu0 0
    %675 = vmatprep.subr.bf16.mxu0 0
    %676 = vmatpush1.bf16.xpose.msra.mxu0 0
    %677 = vmatprep.subr.bf16.mxu0 0
    %678 = vmatpush1.bf16.xpose.msra.mxu0 0
    %679 = vmatprep.subr.bf16.mxu0 0
    %680 = vmatpush1.bf16.xpose.msra.mxu0 0
    %681 = vmatprep.subr.bf16.mxu0 0
    %682 = vmatpush1.bf16.xpose.msra.mxu0 0
    %683 = vmatprep.subr.bf16.mxu0 0
    %684 = vmatpush1.bf16.xpose.msra.mxu0 0
    %685 = vmatprep.subr.bf16.mxu0 0
    %686 = vmatpush1.bf16.xpose.msra.mxu0 0
    %687 = vmatprep.subr.bf16.mxu0 0
    %688 = vmatpush1.bf16.xpose.msra.mxu0 0
    %689 = vmatprep.mubr.bf16.mxu0 0
    %690 = vmatmul.mubr.bf16.gmra.mrb[0].mxu0 %v652
    %v691 = vpop.f32.mrb[0].mxu0
    %v692 = vadd.f32 0.0, %v691
    %v693 = vpop.f32.mrb[0].mxu0
    %v694 = vpop.f32.mrb[0].mxu0
    %v695 = vpop.f32.mrb[0].mxu0
    %696 = vdwg.mxu0
    %v698 = vsel %vm466, %v367, 0
    %v701 = vsel %vm466, %v415, 0
    %703 = vmatprep.subr.bf16.mxu0 0
    %704 = vmatpush1.bf16.xpose.msra.mxu0 %v701
    %705 = vmatprep.subr.bf16.mxu0 0
    %706 = vmatpush1.bf16.xpose.msra.mxu0 0
    %707 = vmatprep.subr.bf16.mxu0 0
    %708 = vmatpush1.bf16.xpose.msra.mxu0 0
    %709 = vmatprep.subr.bf16.mxu0 0
    %710 = vmatpush1.bf16.xpose.msra.mxu0 0
    %711 = vmatprep.subr.bf16.mxu0 0
    %712 = vmatpush1.bf16.xpose.msra.mxu0 0
    %713 = vmatprep.subr.bf16.mxu0 0
    %714 = vmatpush1.bf16.xpose.msra.mxu0 0
    %715 = vmatprep.subr.bf16.mxu0 0
    %716 = vmatpush1.bf16.xpose.msra.mxu0 0
    %717 = vmatprep.subr.bf16.mxu0 0
    %718 = vmatpush1.bf16.xpose.msra.mxu0 0
    %719 = vmatprep.subr.bf16.mxu0 0
    %720 = vmatpush1.bf16.xpose.msra.mxu0 0
    %721 = vmatprep.subr.bf16.mxu0 0
    %722 = vmatpush1.bf16.xpose.msra.mxu0 0
    %723 = vmatprep.subr.bf16.mxu0 0
    %724 = vmatpush1.bf16.xpose.msra.mxu0 0
    %725 = vmatprep.subr.bf16.mxu0 0
    %726 = vmatpush1.bf16.xpose.msra.mxu0 0
    %727 = vmatprep.subr.bf16.mxu0 0
    %728 = vmatpush1.bf16.xpose.msra.mxu0 0
    %729 = vmatprep.subr.bf16.mxu0 0
    %730 = vmatpush1.bf16.xpose.msra.mxu0 0
    %731 = vmatprep.subr.bf16.mxu0 0
    %732 = vmatpush1.bf16.xpose.msra.mxu0 0
    %733 = vmatprep.subr.bf16.mxu0 0
    %734 = vmatpush1.bf16.xpose.msra.mxu0 0
    %735 = vmatprep.mubr.bf16.mxu0 0
    %736 = vmatmul.mubr.bf16.gmra.mrb[0].mxu0 %v698
    %v737 = vpop.f32.mrb[0].mxu0
    %v738 = vadd.f32 0.0, %v737
    %v739 = vpop.f32.mrb[0].mxu0
    %v740 = vpop.f32.mrb[0].mxu0
    %v741 = vpop.f32.mrb[0].mxu0
    %742 = vdwg.mxu0
    %v744 = vsel %vm466, %v368, 0
    %v747 = vsel %vm466, %v416, 0
    %749 = vmatprep.subr.bf16.mxu0 0
    %750 = vmatpush1.bf16.xpose.msra.mxu0 %v747
    %751 = vmatprep.subr.bf16.mxu0 0
    %752 = vmatpush1.bf16.xpose.msra.mxu0 0
    %753 = vmatprep.subr.bf16.mxu0 0
    %754 = vmatpush1.bf16.xpose.msra.mxu0 0
    %755 = vmatprep.subr.bf16.mxu0 0
    %756 = vmatpush1.bf16.xpose.msra.mxu0 0
    %757 = vmatprep.subr.bf16.mxu0 0
    %758 = vmatpush1.bf16.xpose.msra.mxu0 0
    %759 = vmatprep.subr.bf16.mxu0 0
    %760 = vmatpush1.bf16.xpose.msra.mxu0 0
    %761 = vmatprep.subr.bf16.mxu0 0
    %762 = vmatpush1.bf16.xpose.msra.mxu0 0
    %763 = vmatprep.subr.bf16.mxu0 0
    %764 = vmatpush1.bf16.xpose.msra.mxu0 0
    %765 = vmatprep.subr.bf16.mxu0 0
    %766 = vmatpush1.bf16.xpose.msra.mxu0 0
    %767 = vmatprep.subr.bf16.mxu0 0
    %768 = vmatpush1.bf16.xpose.msra.mxu0 0
    %769 = vmatprep.subr.bf16.mxu0 0
    %770 = vmatpush1.bf16.xpose.msra.mxu0 0
    %771 = vmatprep.subr.bf16.mxu0 0
    %772 = vmatpush1.bf16.xpose.msra.mxu0 0
    %773 = vmatprep.subr.bf16.mxu0 0
    %774 = vmatpush1.bf16.xpose.msra.mxu0 0
    %775 = vmatprep.subr.bf16.mxu0 0
    %776 = vmatpush1.bf16.xpose.msra.mxu0 0
    %777 = vmatprep.subr.bf16.mxu0 0
    %778 = vmatpush1.bf16.xpose.msra.mxu0 0
    %779 = vmatprep.subr.bf16.mxu0 0
    %780 = vmatpush1.bf16.xpose.msra.mxu0 0
    %781 = vmatprep.mubr.bf16.mxu0 0
    %782 = vmatmul.mubr.bf16.gmra.mrb[0].mxu0 %v744
    %v783 = vpop.f32.mrb[0].mxu0
    %v784 = vadd.f32 0.0, %v783
    %v785 = vpop.f32.mrb[0].mxu0
    %v786 = vpop.f32.mrb[0].mxu0
    %v787 = vpop.f32.mrb[0].mxu0
    %788 = vdwg.mxu0
    %v790 = vsel %vm466, %v369, 0
    %v793 = vsel %vm466, %v417, 0
    %795 = vmatprep.subr.bf16.mxu0 0
    %796 = vmatpush1.bf16.xpose.msra.mxu0 %v793
    %797 = vmatprep.subr.bf16.mxu0 0
    %798 = vmatpush1.bf16.xpose.msra.mxu0 0
    %799 = vmatprep.subr.bf16.mxu0 0
    %800 = vmatpush1.bf16.xpose.msra.mxu0 0
    %801 = vmatprep.subr.bf16.mxu0 0
    %802 = vmatpush1.bf16.xpose.msra.mxu0 0
    %803 = vmatprep.subr.bf16.mxu0 0
    %804 = vmatpush1.bf16.xpose.msra.mxu0 0
    %805 = vmatprep.subr.bf16.mxu0 0
    %806 = vmatpush1.bf16.xpose.msra.mxu0 0
    %807 = vmatprep.subr.bf16.mxu0 0
    %808 = vmatpush1.bf16.xpose.msra.mxu0 0
    %809 = vmatprep.subr.bf16.mxu0 0
    %810 = vmatpush1.bf16.xpose.msra.mxu0 0
    %811 = vmatprep.subr.bf16.mxu0 0
    %812 = vmatpush1.bf16.xpose.msra.mxu0 0
    %813 = vmatprep.subr.bf16.mxu0 0
    %814 = vmatpush1.bf16.xpose.msra.mxu0 0
    %815 = vmatprep.subr.bf16.mxu0 0
    %816 = vmatpush1.bf16.xpose.msra.mxu0 0
    %817 = vmatprep.subr.bf16.mxu0 0
    %818 = vmatpush1.bf16.xpose.msra.mxu0 0
    %819 = vmatprep.subr.bf16.mxu0 0
    %820 = vmatpush1.bf16.xpose.msra.mxu0 0
    %821 = vmatprep.subr.bf16.mxu0 0
    %822 = vmatpush1.bf16.xpose.msra.mxu0 0
    %823 = vmatprep.subr.bf16.mxu0 0
    %824 = vmatpush1.bf16.xpose.msra.mxu0 0
    %825 = vmatprep.subr.bf16.mxu0 0
    %826 = vmatpush1.bf16.xpose.msra.mxu0 0
    %827 = vmatprep.mubr.bf16.mxu0 0
    %828 = vmatmul.mubr.bf16.gmra.mrb[0].mxu0 %v790
    %v829 = vpop.f32.mrb[0].mxu0
    %v830 = vadd.f32 0.0, %v829
    %v831 = vpop.f32.mrb[0].mxu0
    %v832 = vpop.f32.mrb[0].mxu0
    %v833 = vpop.f32.mrb[0].mxu0
    %834 = vdwg.mxu0
    %vm835 = vcmask 130048
    %v836 = vsel %vm835, %v508, -inf
    %837 = vmax.xlane.f32.xlu0 %v836
    %v838 = vpop.xlane.xlu0 %837
    %v839 = vsel %vm835, %v554, -inf
    %840 = vmax.xlane.f32.xlu0 %v839
    %v841 = vpop.xlane.xlu0 %840
    %v842 = vsel %vm835, %v600, -inf
    %843 = vmax.xlane.f32.xlu0 %v842
    %v844 = vpop.xlane.xlu0 %843
    %v845 = vsel %vm835, %v646, -inf
    %846 = vmax.xlane.f32.xlu0 %v845
    %v847 = vpop.xlane.xlu0 %846
    %v848 = vsel %vm835, %v692, -inf
    %849 = vmax.xlane.f32.xlu0 %v848
    %v850 = vpop.xlane.xlu0 %849
    %v851 = vsel %vm835, %v738, -inf
    %852 = vmax.xlane.f32.xlu0 %v851
    %v853 = vpop.xlane.xlu0 %852
    %v854 = vsel %vm835, %v784, -inf
    %855 = vmax.xlane.f32.xlu0 %v854
    %v856 = vpop.xlane.xlu0 %855
    %v857 = vsel %vm835, %v830, -inf
    %858 = vmax.xlane.f32.xlu0 %v857
    %v859 = vpop.xlane.xlu0 %858
    %v860 = vsub.f32 %v508, %v838
    %v861 = vsub.f32 %v554, %v841
    %v862 = vsub.f32 %v600, %v844
    %v863 = vsub.f32 %v646, %v847
    %v864 = vsub.f32 %v692, %v850
    %v865 = vsub.f32 %v738, %v853
    %v866 = vsub.f32 %v784, %v856
    %v867 = vsub.f32 %v830, %v859
    %v868 = vmul.f32 %v860, 1.442695
    %v869 = vpow.pop %v868
    %v870 = vmul.f32 %v861, 1.442695
    %v871 = vpow.pop %v870
    %v872 = vmul.f32 %v862, 1.442695
    %v873 = vpow.pop %v872
    %v874 = vmul.f32 %v863, 1.442695
    %v875 = vpow.pop %v874
    %v876 = vmul.f32 %v864, 1.442695
    %v877 = vpow.pop %v876
    %v878 = vmul.f32 %v865, 1.442695
    %v879 = vpow.pop %v878
    %v880 = vmul.f32 %v866, 1.442695
    %v881 = vpow.pop %v880
    %v882 = vmul.f32 %v867, 1.442695
    %v883 = vpow.pop %v882
    %v884 = vsel %vm835, %v869, 0.0
    %885 = vadd.xlane.f32.xlu0 %v884
    %v886 = vpop.xlane.xlu0 %885
    %v887 = vsel %vm835, %v871, 0.0
    %888 = vadd.xlane.f32.xlu0 %v887
    %v889 = vpop.xlane.xlu0 %888
    %v890 = vsel %vm835, %v873, 0.0
    %891 = vadd.xlane.f32.xlu0 %v890
    %v892 = vpop.xlane.xlu0 %891
    %v893 = vsel %vm835, %v875, 0.0
    %894 = vadd.xlane.f32.xlu0 %v893
    %v895 = vpop.xlane.xlu0 %894
    %v896 = vsel %vm835, %v877, 0.0
    %897 = vadd.xlane.f32.xlu0 %v896
    %v898 = vpop.xlane.xlu0 %897
    %v899 = vsel %vm835, %v879, 0.0
    %900 = vadd.xlane.f32.xlu0 %v899
    %v901 = vpop.xlane.xlu0 %900
    %v902 = vsel %vm835, %v881, 0.0
    %903 = vadd.xlane.f32.xlu0 %v902
    %v904 = vpop.xlane.xlu0 %903
    %v905 = vsel %vm835, %v883, 0.0
    %906 = vadd.xlane.f32.xlu0 %v905
    %v907 = vpop.xlane.xlu0 %906
    %v908 = vrcp.pop %v886
    %v909 = vmul.f32 %v869, %v908
    %v910 = vrcp.pop %v889
    %v911 = vmul.f32 %v871, %v910
    %v912 = vrcp.pop %v892
    %v913 = vmul.f32 %v873, %v912
    %v914 = vrcp.pop %v895
    %v915 = vmul.f32 %v875, %v914
    %v916 = vrcp.pop %v898
    %v917 = vmul.f32 %v877, %v916
    %v918 = vrcp.pop %v901
    %v919 = vmul.f32 %v879, %v918
    %v920 = vrcp.pop %v904
    %v921 = vmul.f32 %v881, %v920
    %v922 = vrcp.pop %v907
    %v923 = vmul.f32 %v883, %v922
    %v924 = vpack.c.bf16 %v909, %v909
    %v925 = vpack.c.bf16 %v911, %v911
    %v926 = vpack.c.bf16 %v913, %v913
    %v927 = vpack.c.bf16 %v915, %v915
    %v928 = vpack.c.bf16 %v917, %v917
    %v929 = vpack.c.bf16 %v919, %v919
    %v930 = vpack.c.bf16 %v921, %v921
    %v931 = vpack.c.bf16 %v923, %v923
    %v933 = vsel %vm835, %v924, 0
    %935 = vmatprep.subr.bf16.mxu0 0
    %936 = vmatpush1.bf16.msra.mxu0 %v458
    %937 = vmatprep.subr.bf16.mxu0 0
    %938 = vmatpush1.bf16.msra.mxu0 0
    %939 = vmatprep.subr.bf16.mxu0 0
    %940 = vmatpush1.bf16.msra.mxu0 0
    %941 = vmatprep.subr.bf16.mxu0 0
    %942 = vmatpush1.bf16.msra.mxu0 0
    %943 = vmatprep.subr.bf16.mxu0 0
    %944 = vmatpush1.bf16.msra.mxu0 0
    %945 = vmatprep.subr.bf16.mxu0 0
    %946 = vmatpush1.bf16.msra.mxu0 0
    %947 = vmatprep.subr.bf16.mxu0 0
    %948 = vmatpush1.bf16.msra.mxu0 0
    %949 = vmatprep.subr.bf16.mxu0 0
    %950 = vmatpush1.bf16.msra.mxu0 0
    %951 = vmatprep.subr.bf16.mxu0 0
    %952 = vmatpush1.bf16.msra.mxu0 0
    %953 = vmatprep.subr.bf16.mxu0 0
    %954 = vmatpush1.bf16.msra.mxu0 0
    %955 = vmatprep.subr.bf16.mxu0 0
    %956 = vmatpush1.bf16.msra.mxu0 0
    %957 = vmatprep.subr.bf16.mxu0 0
    %958 = vmatpush1.bf16.msra.mxu0 0
    %959 = vmatprep.subr.bf16.mxu0 0
    %960 = vmatpush1.bf16.msra.mxu0 0
    %961 = vmatprep.subr.bf16.mxu0 0
    %962 = vmatpush1.bf16.msra.mxu0 0
    %963 = vmatprep.subr.bf16.mxu0 0
    %964 = vmatpush1.bf16.msra.mxu0 0
    %965 = vmatprep.subr.bf16.mxu0 0
    %966 = vmatpush1.bf16.msra.mxu0 0
    %967 = vmatprep.mubr.bf16.mxu0 0
    %968 = vmatmul.mubr.bf16.gmra.mrb[0].mxu0 %v933
    %v969 = vpop.f32.mrb[0].mxu0
    %v970 = vadd.f32 0.0, %v969
    %v971 = vpop.f32.mrb[0].mxu0
    %v972 = vpop.f32.mrb[0].mxu0
    %v973 = vpop.f32.mrb[0].mxu0
    %974 = vdwg.mxu0
    %v976 = vsel %vm835, %v925, 0
    %978 = vmatprep.subr.bf16.mxu0 0
    %979 = vmatpush1.bf16.msra.mxu0 %v459
    %980 = vmatprep.subr.bf16.mxu0 0
    %981 = vmatpush1.bf16.msra.mxu0 0
    %982 = vmatprep.subr.bf16.mxu0 0
    %983 = vmatpush1.bf16.msra.mxu0 0
    %984 = vmatprep.subr.bf16.mxu0 0
    %985 = vmatpush1.bf16.msra.mxu0 0
    %986 = vmatprep.subr.bf16.mxu0 0
    %987 = vmatpush1.bf16.msra.mxu0 0
    %988 = vmatprep.subr.bf16.mxu0 0
    %989 = vmatpush1.bf16.msra.mxu0 0
    %990 = vmatprep.subr.bf16.mxu0 0
    %991 = vmatpush1.bf16.msra.mxu0 0
    %992 = vmatprep.subr.bf16.mxu0 0
    %993 = vmatpush1.bf16.msra.mxu0 0
    %994 = vmatprep.subr.bf16.mxu0 0
    %995 = vmatpush1.bf16.msra.mxu0 0
    %996 = vmatprep.subr.bf16.mxu0 0
    %997 = vmatpush1.bf16.msra.mxu0 0
    %998 = vmatprep.subr.bf16.mxu0 0
    %999 = vmatpush1.bf16.msra.mxu0 0
    %1000 = vmatprep.subr.bf16.mxu0 0
    %1001 = vmatpush1.bf16.msra.mxu0 0
    %1002 = vmatprep.subr.bf16.mxu0 0
    %1003 = vmatpush1.bf16.msra.mxu0 0
    %1004 = vmatprep.subr.bf16.mxu0 0
    %1005 = vmatpush1.bf16.msra.mxu0 0
    %1006 = vmatprep.subr.bf16.mxu0 0
    %1007 = vmatpush1.bf16.msra.mxu0 0
    %1008 = vmatprep.subr.bf16.mxu0 0
    %1009 = vmatpush1.bf16.msra.mxu0 0
    %1010 = vmatprep.mubr.bf16.mxu0 0
    %1011 = vmatmul.mubr.bf16.gmra.mrb[0].mxu0 %v976
    %v1012 = vpop.f32.mrb[0].mxu0
    %v1013 = vadd.f32 0.0, %v1012
    %v1014 = vpop.f32.mrb[0].mxu0
    %v1015 = vpop.f32.mrb[0].mxu0
    %v1016 = vpop.f32.mrb[0].mxu0
    %1017 = vdwg.mxu0
    %v1019 = vsel %vm835, %v926, 0
    %1021 = vmatprep.subr.bf16.mxu0 0
    %1022 = vmatpush1.bf16.msra.mxu0 %v460
    %1023 = vmatprep.subr.bf16.mxu0 0
    %1024 = vmatpush1.bf16.msra.mxu0 0
    %1025 = vmatprep.subr.bf16.mxu0 0
    %1026 = vmatpush1.bf16.msra.mxu0 0
    %1027 = vmatprep.subr.bf16.mxu0 0
    %1028 = vmatpush1.bf16.msra.mxu0 0
    %1029 = vmatprep.subr.bf16.mxu0 0
    %1030 = vmatpush1.bf16.msra.mxu0 0
    %1031 = vmatprep.subr.bf16.mxu0 0
    %1032 = vmatpush1.bf16.msra.mxu0 0
    %1033 = vmatprep.subr.bf16.mxu0 0
    %1034 = vmatpush1.bf16.msra.mxu0 0
    %1035 = vmatprep.subr.bf16.mxu0 0
    %1036 = vmatpush1.bf16.msra.mxu0 0
    %1037 = vmatprep.subr.bf16.mxu0 0
    %1038 = vmatpush1.bf16.msra.mxu0 0
    %1039 = vmatprep.subr.bf16.mxu0 0
    %1040 = vmatpush1.bf16.msra.mxu0 0
    %1041 = vmatprep.subr.bf16.mxu0 0
    %1042 = vmatpush1.bf16.msra.mxu0 0
    %1043 = vmatprep.subr.bf16.mxu0 0
    %1044 = vmatpush1.bf16.msra.mxu0 0
    %1045 = vmatprep.subr.bf16.mxu0 0
    %1046 = vmatpush1.bf16.msra.mxu0 0
    %1047 = vmatprep.subr.bf16.mxu0 0
    %1048 = vmatpush1.bf16.msra.mxu0 0
    %1049 = vmatprep.subr.bf16.mxu0 0
    %1050 = vmatpush1.bf16.msra.mxu0 0
    %1051 = vmatprep.subr.bf16.mxu0 0
    %1052 = vmatpush1.bf16.msra.mxu0 0
    %1053 = vmatprep.mubr.bf16.mxu0 0
    %1054 = vmatmul.mubr.bf16.gmra.mrb[0].mxu0 %v1019
    %v1055 = vpop.f32.mrb[0].mxu0
    %v1056 = vadd.f32 0.0, %v1055
    %v1057 = vpop.f32.mrb[0].mxu0
    %v1058 = vpop.f32.mrb[0].mxu0
    %v1059 = vpop.f32.mrb[0].mxu0
    %1060 = vdwg.mxu0
    %v1062 = vsel %vm835, %v927, 0
    %1064 = vmatprep.subr.bf16.mxu0 0
    %1065 = vmatpush1.bf16.msra.mxu0 %v461
    %1066 = vmatprep.subr.bf16.mxu0 0
    %1067 = vmatpush1.bf16.msra.mxu0 0
    %1068 = vmatprep.subr.bf16.mxu0 0
    %1069 = vmatpush1.bf16.msra.mxu0 0
    %1070 = vmatprep.subr.bf16.mxu0 0
    %1071 = vmatpush1.bf16.msra.mxu0 0
    %1072 = vmatprep.subr.bf16.mxu0 0
    %1073 = vmatpush1.bf16.msra.mxu0 0
    %1074 = vmatprep.subr.bf16.mxu0 0
    %1075 = vmatpush1.bf16.msra.mxu0 0
    %1076 = vmatprep.subr.bf16.mxu0 0
    %1077 = vmatpush1.bf16.msra.mxu0 0
    %1078 = vmatprep.subr.bf16.mxu0 0
    %1079 = vmatpush1.bf16.msra.mxu0 0
    %1080 = vmatprep.subr.bf16.mxu0 0
    %1081 = vmatpush1.bf16.msra.mxu0 0
    %1082 = vmatprep.subr.bf16.mxu0 0
    %1083 = vmatpush1.bf16.msra.mxu0 0
    %1084 = vmatprep.subr.bf16.mxu0 0
    %1085 = vmatpush1.bf16.msra.mxu0 0
    %1086 = vmatprep.subr.bf16.mxu0 0
    %1087 = vmatpush1.bf16.msra.mxu0 0
    %1088 = vmatprep.subr.bf16.mxu0 0
    %1089 = vmatpush1.bf16.msra.mxu0 0
    %1090 = vmatprep.subr.bf16.mxu0 0
    %1091 = vmatpush1.bf16.msra.mxu0 0
    %1092 = vmatprep.subr.bf16.mxu0 0
    %1093 = vmatpush1.bf16.msra.mxu0 0
    %1094 = vmatprep.subr.bf16.mxu0 0
    %1095 = vmatpush1.bf16.msra.mxu0 0
    %1096 = vmatprep.mubr.bf16.mxu0 0
    %1097 = vmatmul.mubr.bf16.gmra.mrb[0].mxu0 %v1062
    %v1098 = vpop.f32.mrb[0].mxu0
    %v1099 = vadd.f32 0.0, %v1098
    %v1100 = vpop.f32.mrb[0].mxu0
    %v1101 = vpop.f32.mrb[0].mxu0
    %v1102 = vpop.f32.mrb[0].mxu0
    %1103 = vdwg.mxu0
    %v1105 = vsel %vm835, %v928, 0
    %1107 = vmatprep.subr.bf16.mxu0 0
    %1108 = vmatpush1.bf16.msra.mxu0 %v462
    %1109 = vmatprep.subr.bf16.mxu0 0
    %1110 = vmatpush1.bf16.msra.mxu0 0
    %1111 = vmatprep.subr.bf16.mxu0 0
    %1112 = vmatpush1.bf16.msra.mxu0 0
    %1113 = vmatprep.subr.bf16.mxu0 0
    %1114 = vmatpush1.bf16.msra.mxu0 0
    %1115 = vmatprep.subr.bf16.mxu0 0
    %1116 = vmatpush1.bf16.msra.mxu0 0
    %1117 = vmatprep.subr.bf16.mxu0 0
    %1118 = vmatpush1.bf16.msra.mxu0 0
    %1119 = vmatprep.subr.bf16.mxu0 0
    %1120 = vmatpush1.bf16.msra.mxu0 0
    %1121 = vmatprep.subr.bf16.mxu0 0
    %1122 = vmatpush1.bf16.msra.mxu0 0
    %1123 = vmatprep.subr.bf16.mxu0 0
    %1124 = vmatpush1.bf16.msra.mxu0 0
    %1125 = vmatprep.subr.bf16.mxu0 0
    %1126 = vmatpush1.bf16.msra.mxu0 0
    %1127 = vmatprep.subr.bf16.mxu0 0
    %1128 = vmatpush1.bf16.msra.mxu0 0
    %1129 = vmatprep.subr.bf16.mxu0 0
    %1130 = vmatpush1.bf16.msra.mxu0 0
    %1131 = vmatprep.subr.bf16.mxu0 0
    %1132 = vmatpush1.bf16.msra.mxu0 0
    %1133 = vmatprep.subr.bf16.mxu0 0
    %1134 = vmatpush1.bf16.msra.mxu0 0
    %1135 = vmatprep.subr.bf16.mxu0 0
    %1136 = vmatpush1.bf16.msra.mxu0 0
    %1137 = vmatprep.subr.bf16.mxu0 0
    %1138 = vmatpush1.bf16.msra.mxu0 0
    %1139 = vmatprep.mubr.bf16.mxu0 0
    %1140 = vmatmul.mubr.bf16.gmra.mrb[0].mxu0 %v1105
    %v1141 = vpop.f32.mrb[0].mxu0
    %v1142 = vadd.f32 0.0, %v1141
    %v1143 = vpop.f32.mrb[0].mxu0
    %v1144 = vpop.f32.mrb[0].mxu0
    %v1145 = vpop.f32.mrb[0].mxu0
    %1146 = vdwg.mxu0
    %v1148 = vsel %vm835, %v929, 0
    %1150 = vmatprep.subr.bf16.mxu0 0
    %1151 = vmatpush1.bf16.msra.mxu0 %v463
    %1152 = vmatprep.subr.bf16.mxu0 0
    %1153 = vmatpush1.bf16.msra.mxu0 0
    %1154 = vmatprep.subr.bf16.mxu0 0
    %1155 = vmatpush1.bf16.msra.mxu0 0
    %1156 = vmatprep.subr.bf16.mxu0 0
    %1157 = vmatpush1.bf16.msra.mxu0 0
    %1158 = vmatprep.subr.bf16.mxu0 0
    %1159 = vmatpush1.bf16.msra.mxu0 0
    %1160 = vmatprep.subr.bf16.mxu0 0
    %1161 = vmatpush1.bf16.msra.mxu0 0
    %1162 = vmatprep.subr.bf16.mxu0 0
    %1163 = vmatpush1.bf16.msra.mxu0 0
    %1164 = vmatprep.subr.bf16.mxu0 0
    %1165 = vmatpush1.bf16.msra.mxu0 0
    %1166 = vmatprep.subr.bf16.mxu0 0
    %1167 = vmatpush1.bf16.msra.mxu0 0
    %1168 = vmatprep.subr.bf16.mxu0 0
    %1169 = vmatpush1.bf16.msra.mxu0 0
    %1170 = vmatprep.subr.bf16.mxu0 0
    %1171 = vmatpush1.bf16.msra.mxu0 0
    %1172 = vmatprep.subr.bf16.mxu0 0
    %1173 = vmatpush1.bf16.msra.mxu0 0
    %1174 = vmatprep.subr.bf16.mxu0 0
    %1175 = vmatpush1.bf16.msra.mxu0 0
    %1176 = vmatprep.subr.bf16.mxu0 0
    %1177 = vmatpush1.bf16.msra.mxu0 0
    %1178 = vmatprep.subr.bf16.mxu0 0
    %1179 = vmatpush1.bf16.msra.mxu0 0
    %1180 = vmatprep.subr.bf16.mxu0 0
    %1181 = vmatpush1.bf16.msra.mxu0 0
    %1182 = vmatprep.mubr.bf16.mxu0 0
    %1183 = vmatmul.mubr.bf16.gmra.mrb[0].mxu0 %v1148
    %v1184 = vpop.f32.mrb[0].mxu0
    %v1185 = vadd.f32 0.0, %v1184
    %v1186 = vpop.f32.mrb[0].mxu0
    %v1187 = vpop.f32.mrb[0].mxu0
    %v1188 = vpop.f32.mrb[0].mxu0
    %1189 = vdwg.mxu0
    %v1191 = vsel %vm835, %v930, 0
    %1193 = vmatprep.subr.bf16.mxu0 0
    %1194 = vmatpush1.bf16.msra.mxu0 %v464
    %1195 = vmatprep.subr.bf16.mxu0 0
    %1196 = vmatpush1.bf16.msra.mxu0 0
    %1197 = vmatprep.subr.bf16.mxu0 0
    %1198 = vmatpush1.bf16.msra.mxu0 0
    %1199 = vmatprep.subr.bf16.mxu0 0
    %1200 = vmatpush1.bf16.msra.mxu0 0
    %1201 = vmatprep.subr.bf16.mxu0 0
    %1202 = vmatpush1.bf16.msra.mxu0 0
    %1203 = vmatprep.subr.bf16.mxu0 0
    %1204 = vmatpush1.bf16.msra.mxu0 0
    %1205 = vmatprep.subr.bf16.mxu0 0
    %1206 = vmatpush1.bf16.msra.mxu0 0
    %1207 = vmatprep.subr.bf16.mxu0 0
    %1208 = vmatpush1.bf16.msra.mxu0 0
    %1209 = vmatprep.subr.bf16.mxu0 0
    %1210 = vmatpush1.bf16.msra.mxu0 0
    %1211 = vmatprep.subr.bf16.mxu0 0
    %1212 = vmatpush1.bf16.msra.mxu0 0
    %1213 = vmatprep.subr.bf16.mxu0 0
    %1214 = vmatpush1.bf16.msra.mxu0 0
    %1215 = vmatprep.subr.bf16.mxu0 0
    %1216 = vmatpush1.bf16.msra.mxu0 0
    %1217 = vmatprep.subr.bf16.mxu0 0
    %1218 = vmatpush1.bf16.msra.mxu0 0
    %1219 = vmatprep.subr.bf16.mxu0 0
    %1220 = vmatpush1.bf16.msra.mxu0 0
    %1221 = vmatprep.subr.bf16.mxu0 0
    %1222 = vmatpush1.bf16.msra.mxu0 0
    %1223 = vmatprep.subr.bf16.mxu0 0
    %1224 = vmatpush1.bf16.msra.mxu0 0
    %1225 = vmatprep.mubr.bf16.mxu0 0
    %1226 = vmatmul.mubr.bf16.gmra.mrb[0].mxu0 %v1191
    %v1227 = vpop.f32.mrb[0].mxu0
    %v1228 = vadd.f32 0.0, %v1227
    %v1229 = vpop.f32.mrb[0].mxu0
    %v1230 = vpop.f32.mrb[0].mxu0
    %v1231 = vpop.f32.mrb[0].mxu0
    %1232 = vdwg.mxu0
    %v1234 = vsel %vm835, %v931, 0
    %1236 = vmatprep.subr.bf16.mxu0 0
    %1237 = vmatpush1.bf16.msra.mxu0 %v465
    %1238 = vmatprep.subr.bf16.mxu0 0
    %1239 = vmatpush1.bf16.msra.mxu0 0
    %1240 = vmatprep.subr.bf16.mxu0 0
    %1241 = vmatpush1.bf16.msra.mxu0 0
    %1242 = vmatprep.subr.bf16.mxu0 0
    %1243 = vmatpush1.bf16.msra.mxu0 0
    %1244 = vmatprep.subr.bf16.mxu0 0
    %1245 = vmatpush1.bf16.msra.mxu0 0
    %1246 = vmatprep.subr.bf16.mxu0 0
    %1247 = vmatpush1.bf16.msra.mxu0 0
    %1248 = vmatprep.subr.bf16.mxu0 0
    %1249 = vmatpush1.bf16.msra.mxu0 0
    %1250 = vmatprep.subr.bf16.mxu0 0
    %1251 = vmatpush1.bf16.msra.mxu0 0
    %1252 = vmatprep.subr.bf16.mxu0 0
    %1253 = vmatpush1.bf16.msra.mxu0 0
    %1254 = vmatprep.subr.bf16.mxu0 0
    %1255 = vmatpush1.bf16.msra.mxu0 0
    %1256 = vmatprep.subr.bf16.mxu0 0
    %1257 = vmatpush1.bf16.msra.mxu0 0
    %1258 = vmatprep.subr.bf16.mxu0 0
    %1259 = vmatpush1.bf16.msra.mxu0 0
    %1260 = vmatprep.subr.bf16.mxu0 0
    %1261 = vmatpush1.bf16.msra.mxu0 0
    %1262 = vmatprep.subr.bf16.mxu0 0
    %1263 = vmatpush1.bf16.msra.mxu0 0
    %1264 = vmatprep.subr.bf16.mxu0 0
    %1265 = vmatpush1.bf16.msra.mxu0 0
    %1266 = vmatprep.subr.bf16.mxu0 0
    %1267 = vmatpush1.bf16.msra.mxu0 0
    %1268 = vmatprep.mubr.bf16.mxu0 0
    %1269 = vmatmul.mubr.bf16.gmra.mrb[0].mxu0 %v1234
    %v1270 = vpop.f32.mrb[0].mxu0
    %v1271 = vadd.f32 0.0, %v1270
    %v1272 = vpop.f32.mrb[0].mxu0
    %v1273 = vpop.f32.mrb[0].mxu0
    %v1274 = vpop.f32.mrb[0].mxu0
    %1275 = vdwg.mxu0
    %1277 = vrot.lane.b32.xlu0 %v1013, 8
    %v1278 = vpop.permute.xlu0 %1277
    %1281 = vrot.lane.b32.xlu0 %v1056, 16
    %v1282 = vpop.permute.xlu0 %1281
    %1285 = vrot.lane.b32.xlu0 %v1099, 24
    %v1286 = vpop.permute.xlu0 %1285
    %v1288 = vsel %vm466, %v970, %v1278
    %v1289 = vsel %vm835, %v1288, %v1282
    %vm1290 = vcmask 195584
    %v1291 = vsel %vm1290, %v1289, %v1286
    %1293 = vrot.lane.b32.xlu0 %v1185, 8
    %v1294 = vpop.permute.xlu0 %1293
    %1297 = vrot.lane.b32.xlu0 %v1228, 16
    %v1298 = vpop.permute.xlu0 %1297
    %1301 = vrot.lane.b32.xlu0 %v1271, 24
    %v1302 = vpop.permute.xlu0 %1301
    %v1304 = vsel %vm466, %v1142, %v1294
    %v1305 = vsel %vm835, %v1304, %v1298
    %v1306 = vsel %vm1290, %v1305, %v1302
    %v1307 = vpack.c.bf16 %v1306, %v1291
    %v1308 = vld [vmem:[%s5] sm:$0xf]
    %v1309 = vld [vmem:[%s5 + $0x4] sm:$0xf]
    %v1310 = vld [vmem:[%s5 + $0x8] sm:$0xf]
    %v1311 = vld [vmem:[%s5 + $0xc] sm:$0xf]
    %v1312 = vld [vmem:[%s6] sm:$0x1]
    %v1314 = vlaneseq
    %v1315 = vshrl.u32 %v1314, 7
    %v1316 = vsub.s32 0, %v1315
    %v1317 = vrot.slane %v1312, %v1316
    %v1323 = vunpack.c.l.b16 %v1308
    %v1324 = vunpack.c.l.b16 %v1309
    %v1325 = vunpack.c.l.b16 %v1310
    %v1326 = vunpack.c.l.b16 %v1311
    %v1327 = vpack.c.b16 %v1324, %v1323
    %v1328 = vpack.c.b16 %v1326, %v1325
    %v1332 = vsel %vm137, %v1307, 0
    %1334 = vmatprep.subr.bf16.mxu0 0
    %1335 = vmatpush1.bf16.msra.mxu0 %v1327
    %1336 = vmatprep.subr.bf16.mxu0 0
    %1337 = vmatpush1.bf16.msra.mxu0 %v1328
    %1338 = vmatprep.subr.bf16.mxu0 0
    %1339 = vmatpush1.bf16.msra.mxu0 0
    %1340 = vmatprep.subr.bf16.mxu0 0
    %1341 = vmatpush1.bf16.msra.mxu0 0
    %1342 = vmatprep.subr.bf16.mxu0 0
    %1343 = vmatpush1.bf16.msra.mxu0 0
    %1344 = vmatprep.subr.bf16.mxu0 0
    %1345 = vmatpush1.bf16.msra.mxu0 0
    %1346 = vmatprep.subr.bf16.mxu0 0
    %1347 = vmatpush1.bf16.msra.mxu0 0
    %1348 = vmatprep.subr.bf16.mxu0 0
    %1349 = vmatpush1.bf16.msra.mxu0 0
    %1350 = vmatprep.subr.bf16.mxu0 0
    %1351 = vmatpush1.bf16.msra.mxu0 0
    %1352 = vmatprep.subr.bf16.mxu0 0
    %1353 = vmatpush1.bf16.msra.mxu0 0
    %1354 = vmatprep.subr.bf16.mxu0 0
    %1355 = vmatpush1.bf16.msra.mxu0 0
    %1356 = vmatprep.subr.bf16.mxu0 0
    %1357 = vmatpush1.bf16.msra.mxu0 0
    %1358 = vmatprep.subr.bf16.mxu0 0
    %1359 = vmatpush1.bf16.msra.mxu0 0
    %1360 = vmatprep.subr.bf16.mxu0 0
    %1361 = vmatpush1.bf16.msra.mxu0 0
    %1362 = vmatprep.subr.bf16.mxu0 0
    %1363 = vmatpush1.bf16.msra.mxu0 0
    %1364 = vmatprep.subr.bf16.mxu0 0
    %1365 = vmatpush1.bf16.msra.mxu0 0
    %1366 = vmatprep.mubr.bf16.mxu0 0
    %1367 = vmatmul.mubr.bf16.gmra.mrb[0].mxu0 %v1332
    %v1368 = vpop.f32.mrb[0].mxu0
    %v1369 = vadd.f32 %v1317, %v1368
    %v1370 = vpop.f32.mrb[0].mxu0
    %v1371 = vpop.f32.mrb[0].mxu0
    %v1372 = vadd.f32 %v1317, %v1371
    %v1373 = vpop.f32.mrb[0].mxu0
    %1374 = vdwg.mxu0
    %1375 = vst.msk [vmem:[#allocation11] sm:$0xff] %vm137, %v1369
    %1376 = vst.msk [vmem:[#allocation11 + $0x8] sm:$0xff] %vm137, %v1372
    %1378 = vrot.lane.b32.xlu0 %v911, 16
    %v1379 = vpop.permute.xlu0 %1378
    %1382 = vrot.lane.b32.xlu0 %v913, 32
    %v1383 = vpop.permute.xlu0 %1382
    %1386 = vrot.lane.b32.xlu0 %v915, 48
    %v1387 = vpop.permute.xlu0 %1386
    %v1389 = vsel %vm835, %v909, %v1379
    %v1390 = vsel %vm137, %v1389, %v1383
    %vm1391 = vcmask 392192
    %v1392 = vsel %vm1391, %v1390, %v1387
    %1394 = vrot.lane.b32.xlu0 %v919, 16
    %v1395 = vpop.permute.xlu0 %1394
    %1398 = vrot.lane.b32.xlu0 %v921, 32
    %v1399 = vpop.permute.xlu0 %1398
    %1402 = vrot.lane.b32.xlu0 %v923, 48
    %v1403 = vpop.permute.xlu0 %1402
    %v1405 = vsel %vm835, %v917, %v1395
    %v1406 = vsel %vm137, %v1405, %v1399
    %v1407 = vsel %vm1391, %v1406, %v1403
    %vm1408 = vcmask 523264
    %1409 = vst.msk [vmem:[#allocation12] sm:$0xff] %vm1408, %v1392
    %1410 = vst.msk [vmem:[#allocation12 + $0x8] sm:$0xff] %vm1408, %v1407
    // Predicated region
    $region50: #{tpu_custom_call.1} parent=1 // pred_check
      _
    $region51: #{tpu_custom_call.1} parent=1 // pred_check_branch
      %1412 = sbr.rel (0) target = $region53
    $region52: #{tpu_custom_call.1} parent=1 // pred_region
      %s1414 = ssub.s32 256, 256
      %1415 = vsyncadd [#allocation4], %s1414
      %s1416 = sshll.u32 [#allocation11], 4
      %s1417 = int_to_ptr.vmem [resolvable:$true] %s1416
      %1422 = dma.vmem_to_hbm [thread:$0]  %s1417, 256, %s7, [#allocation4], 128, 128, 8
    $region53: #{tpu_custom_call.1} parent=1 // pred_fallthru
      _
    // Predicated region
    $region54: #{tpu_custom_call.1} parent=1 // pred_check
      _
    $region55: #{tpu_custom_call.1} parent=1 // pred_check_branch
      %1424 = sbr.rel (0) target = $region57
    $region56: #{tpu_custom_call.1} parent=1 // pred_region
      %s1426 = ssub.s32 256, 256
      %1427 = vsyncadd [#allocation13], %s1426
      %s1428 = sshll.u32 [#allocation12], 4
      %s1429 = int_to_ptr.vmem [resolvable:$true] %s1428
      %1434 = dma.vmem_to_hbm [thread:$0]  %s1429, 256, %s8, [#allocation13], 128, 128, 8
    $region57: #{tpu_custom_call.1} parent=1 // pred_fallthru
      _
    // Predicated region
    $region58: #{tpu_custom_call.1} parent=1 // pred_check
      _
    $region59: #{tpu_custom_call.1} parent=1 // pred_check_branch
      %1436 = sbr.rel (0) target = $region61
    $region60: #{tpu_custom_call.1} parent=1 // pred_region
      %1437 = dma.done [#allocation4], 256
    $region61: #{tpu_custom_call.1} parent=1 // pred_fallthru
      _
    // Predicated region
    $region62: #{tpu_custom_call.1} parent=1 // pred_check
      _
    $region63: #{tpu_custom_call.1} parent=1 // pred_check_branch
      %1439 = sbr.rel (0) target = $region65
    $region64: #{tpu_custom_call.1} parent=1 // pred_region
      %1440 = dma.done [#allocation13], 256
    $region65: #{tpu_custom_call.1} parent=1 // pred_fallthru
      _
    %1441 = vsyncpa [#allocation3], 1
    %1442 = vsyncpa [#allocation6], 1
    %1443 = vsyncpa [#allocation9], 1
    %1444 = vsyncpa [#allocation4], 1
    %1445 = vsyncpa [#allocation13], 1

</llo_original>
